<compile_context>
chip_gen: v7x
topology: tpu7x:2x2x1
jax: 0.10.0
libtpu: 0.0.40
codegen_flags: <defaults>
</compile_context>

<pallas_src>
import jax
import jax.numpy as jnp
from jax.experimental import pallas as pl
from jax.experimental.pallas import tpu as pltpu


def _leaky_relu(x, slope=0.2):
    return jnp.where(x > 0, x, slope * x)


def _round_up(n, m):
    return ((n + m - 1) // m) * m


def generator_kernel(x_ref,
                     w0_ref, b0_ref,
                     w1_ref, b1_ref,
                     w2_ref, b2_ref,
                     w3_ref, b3_ref,
                     o_ref):
    # Four MXU matmuls (bf16 inputs, f32 accumulation) with VPU LeakyReLU and
    # an EUP tanh on the output.  All weights are VMEM-resident across the
    # batch grid; only the (TM, dim) x-block and (TM, n_out_pad) o-block move
    # per grid step.
    x = x_ref[...].astype(jnp.bfloat16)

    h = jnp.dot(x, w0_ref[...], preferred_element_type=jnp.float32) + b0_ref[...]
    h = _leaky_relu(h)

    h = jnp.dot(h.astype(jnp.bfloat16), w1_ref[...],
                preferred_element_type=jnp.float32) + b1_ref[...]
    h = _leaky_relu(h)

    h = jnp.dot(h.astype(jnp.bfloat16), w2_ref[...],
                preferred_element_type=jnp.float32) + b2_ref[...]
    h = _leaky_relu(h)

    h = jnp.dot(h.astype(jnp.bfloat16), w3_ref[...],
                preferred_element_type=jnp.float32) + b3_ref[...]
    o_ref[...] = jnp.tanh(h)


def generator_forward(x, params, *, tm_max=256):
    """x: (batch, dim) f32.  params: list of (W, b), W as (in, out) f32, b as (1, out) f32."""
    (w0, b0), (w1, b1), (w2, b2), (w3, b3) = params
    batch, dim = x.shape
    n_out = w3.shape[1]

    # --- bf16 weights (biases stay f32) ------------------------------------
    w0b = w0.astype(jnp.bfloat16)
    w1b = w1.astype(jnp.bfloat16)
    w2b = w2.astype(jnp.bfloat16)

    # --- lane-dense output: pad n_out to a multiple of 128 ------------------
    n_out_pad = _round_up(n_out, 128)
    if n_out_pad != n_out:
        w3 = jnp.pad(w3, ((0, 0), (0, n_out_pad - n_out)))
        b3 = jnp.pad(b3, ((0, 0), (0, n_out_pad - n_out)))
    w3b = w3.astype(jnp.bfloat16)

    # --- batch tiling: sublane-aligned, capped at tm_max ---------------------
    tm = min(tm_max, _round_up(batch, 8))
    batch_pad = _round_up(batch, tm)
    if batch_pad != batch:
        x = jnp.pad(x, ((0, batch_pad - batch), (0, 0)))
    grid = (batch_pad // tm,)

    # --- BlockSpecs ----------------------------------------------------------
    x_spec = pl.BlockSpec((tm, dim), lambda i: (i, 0))
    out_spec = pl.BlockSpec((tm, n_out_pad), lambda i: (i, 0))

    def resident(arr):
        # Whole array, same block index every grid step -> fetched once,
        # stays resident in VMEM across the batch loop.
        return pl.BlockSpec(arr.shape, lambda i: (0, 0))

    in_specs = [
        x_spec,
        resident(w0b), resident(b0),
        resident(w1b), resident(b1),
        resident(w2b), resident(b2),
        resident(w3b), resident(b3),
    ]

    # --- cost estimate (advisory for XLA scheduling) -------------------------
    flops = 2 * batch_pad * (dim * 256 + 256 * 512 + 512 * 1024 + 1024 * n_out_pad)
    bytes_accessed = (
        batch_pad * dim * 4
        + int(w0b.size + w1b.size + w2b.size + w3b.size) * 2
        + int(b0.size + b1.size + b2.size + b3.size) * 4
        + batch_pad * n_out_pad * 4
    )
    cost = pl.CostEstimate(flops=flops,
                           transcendentals=batch_pad * n_out_pad,
                           bytes_accessed=bytes_accessed)

    out = pl.pallas_call(
        generator_kernel,
        out_shape=jax.ShapeDtypeStruct((batch_pad, n_out_pad), jnp.float32),
        grid=grid,
        in_specs=in_specs,
        out_specs=out_spec,
        compiler_params=pltpu.CompilerParams(
            dimension_semantics=("parallel",),
        ),
        cost_estimate=cost,
    )(x, w0b, b0, w1b, b1, w2b, b2, w3b, b3)

    return out[:batch, :n_out]


def init_generator_params(key, dim, n_out):
    """Deterministic init mimicking torch.nn.Linear default U(-1/sqrt(in), 1/sqrt(in))."""
    sizes = [(dim, 256), (256, 512), (512, 1024), (1024, n_out)]
    params = []
    for (fan_in, fan_out) in sizes:
        key, kw, kb = jax.random.split(key, 3)
        bound = 1.0 / jnp.sqrt(float(fan_in))
        w = jax.random.uniform(kw, (fan_in, fan_out), jnp.float32, -bound, bound)
        b = jax.random.uniform(kb, (1, fan_out), jnp.float32, -bound, bound)
        params.append((w, b))
    return params


def generator_reference(x, params):
    """Pure-JAX reference using the same bf16-weight / f32-accumulate recipe."""
    def lin(h, w, b):
        return jnp.dot(h.astype(jnp.bfloat16), w.astype(jnp.bfloat16),
                       preferred_element_type=jnp.float32) + b
    (w0, b0), (w1, b1), (w2, b2), (w3, b3) = params
    h = _leaky_relu(lin(x, w0, b0))
    h = _leaky_relu(lin(h, w1, b1))
    h = _leaky_relu(lin(h, w2, b2))
    return jnp.tanh(lin(h, w3, b3))


if __name__ == "__main__":
    # Shapes consistent with the module:
    #   dim (noise features) = 8, input_shape = (16, 16) -> n_out = 16, batch = 2
    dim = 8
    n_out = 16
    batch = 2

    key = jax.random.PRNGKey(0)
    key, kx = jax.random.split(key)
    x = jax.random.normal(kx, (batch, dim), jnp.float32)

    params = init_generator_params(key, dim, n_out)

    out = generator_forward(x, params)
    out = jax.block_until_ready(out)

    ref = generator_reference(x, params)
    assert out.shape == (batch, n_out)
    assert jnp.allclose(out, ref, atol=1e-2, rtol=1e-2), "mismatch vs reference"

    print("KERNEL_OK")
</pallas_src>

<mosaic_0001>
module attributes {stable_mosaic.version = 11 : i64} {
  func.func @generator_kernel(%arg0: i32, %arg1: memref<8x8xf32, #tpu.memory_space<vmem>>, %arg2: memref<8x256xbf16, #tpu.memory_space<vmem>>, %arg3: memref<1x256xf32, #tpu.memory_space<vmem>>, %arg4: memref<256x512xbf16, #tpu.memory_space<vmem>>, %arg5: memref<1x512xf32, #tpu.memory_space<vmem>>, %arg6: memref<512x1024xbf16, #tpu.memory_space<vmem>>, %arg7: memref<1x1024xf32, #tpu.memory_space<vmem>>, %arg8: memref<1024x128xbf16, #tpu.memory_space<vmem>>, %arg9: memref<1x128xf32, #tpu.memory_space<vmem>>, %arg10: memref<8x128xf32, #tpu.memory_space<vmem>>) attributes {dimension_semantics = [#tpu.dimension_semantics<parallel>], iteration_bounds = array<i64: 1>, scalar_prefetch = 0 : i64, scratch_operands = 0 : i64, tpu.core_type = #tpu.core_type<tc>, window_params = [{transform_indices = @transform_0, window_bounds = array<i64: 8, 8>}, {pipeline_mode = #tpu.pipeline_mode<synchronous>, transform_indices = @transform_1, window_bounds = array<i64: 8, 256>}, {pipeline_mode = #tpu.pipeline_mode<synchronous>, transform_indices = @transform_2, window_bounds = array<i64: 1, 256>}, {pipeline_mode = #tpu.pipeline_mode<synchronous>, transform_indices = @transform_3, window_bounds = array<i64: 256, 512>}, {pipeline_mode = #tpu.pipeline_mode<synchronous>, transform_indices = @transform_4, window_bounds = array<i64: 1, 512>}, {pipeline_mode = #tpu.pipeline_mode<synchronous>, transform_indices = @transform_5, window_bounds = array<i64: 512, 1024>}, {pipeline_mode = #tpu.pipeline_mode<synchronous>, transform_indices = @transform_6, window_bounds = array<i64: 1, 1024>}, {pipeline_mode = #tpu.pipeline_mode<synchronous>, transform_indices = @transform_7, window_bounds = array<i64: 1024, 128>}, {pipeline_mode = #tpu.pipeline_mode<synchronous>, transform_indices = @transform_8, window_bounds = array<i64: 1, 128>}, {transform_indices = @transform_9, window_bounds = array<i64: 8, 128>}]} {
    %c0 = arith.constant 0 : index
    %c0_0 = arith.constant 0 : index
    %0 = vector.load %arg1[%c0, %c0_0] : memref<8x8xf32, #tpu.memory_space<vmem>>, vector<8x8xf32>
    %1 = arith.truncf %0 : vector<8x8xf32> to vector<8x8xbf16>
    %c0_1 = arith.constant 0 : index
    %c0_2 = arith.constant 0 : index
    %2 = vector.load %arg2[%c0_1, %c0_2] : memref<8x256xbf16, #tpu.memory_space<vmem>>, vector<8x256xbf16>
    %cst = arith.constant dense<0.000000e+00> : vector<8x256xf32>
    %3 = tpu.matmul %1, %2, %cst {dimension_numbers = #tpu.dot_dimension_numbers<[1], [0], [0], [1], [0, 0, 1, 1], [], []>} : vector<8x8xbf16>, vector<8x256xbf16>, vector<8x256xf32> -> vector<8x256xf32>
    %c0_3 = arith.constant 0 : index
    %c0_4 = arith.constant 0 : index
    %4 = vector.load %arg3[%c0_3, %c0_4] : memref<1x256xf32, #tpu.memory_space<vmem>>, vector<1x256xf32>
    %5 = vector.broadcast %4 : vector<1x256xf32> to vector<8x256xf32>
    %6 = arith.addf %3, %5 : vector<8x256xf32>
    %cst_5 = arith.constant 0.000000e+00 : f32
    %7 = vector.broadcast %cst_5 : f32 to vector<8x256xf32>
    %8 = arith.cmpf ogt, %6, %7 : vector<8x256xf32>
    %cst_6 = arith.constant 2.000000e-01 : f32
    %9 = vector.broadcast %cst_6 : f32 to vector<8x256xf32>
    %10 = arith.mulf %9, %6 : vector<8x256xf32>
    %11 = arith.select %8, %6, %10 : vector<8x256xi1>, vector<8x256xf32>
    %12 = arith.truncf %11 : vector<8x256xf32> to vector<8x256xbf16>
    %c0_7 = arith.constant 0 : index
    %c0_8 = arith.constant 0 : index
    %13 = vector.load %arg4[%c0_7, %c0_8] : memref<256x512xbf16, #tpu.memory_space<vmem>>, vector<256x512xbf16>
    %cst_9 = arith.constant dense<0.000000e+00> : vector<8x512xf32>
    %14 = tpu.matmul %12, %13, %cst_9 {dimension_numbers = #tpu.dot_dimension_numbers<[1], [0], [0], [1], [0, 0, 1, 1], [], []>} : vector<8x256xbf16>, vector<256x512xbf16>, vector<8x512xf32> -> vector<8x512xf32>
    %c0_10 = arith.constant 0 : index
    %c0_11 = arith.constant 0 : index
    %15 = vector.load %arg5[%c0_10, %c0_11] : memref<1x512xf32, #tpu.memory_space<vmem>>, vector<1x512xf32>
    %16 = vector.broadcast %15 : vector<1x512xf32> to vector<8x512xf32>
    %17 = arith.addf %14, %16 : vector<8x512xf32>
    %cst_12 = arith.constant 0.000000e+00 : f32
    %18 = vector.broadcast %cst_12 : f32 to vector<8x512xf32>
    %19 = arith.cmpf ogt, %17, %18 : vector<8x512xf32>
    %cst_13 = arith.constant 2.000000e-01 : f32
    %20 = vector.broadcast %cst_13 : f32 to vector<8x512xf32>
    %21 = arith.mulf %20, %17 : vector<8x512xf32>
    %22 = arith.select %19, %17, %21 : vector<8x512xi1>, vector<8x512xf32>
    %23 = arith.truncf %22 : vector<8x512xf32> to vector<8x512xbf16>
    %c0_14 = arith.constant 0 : index
    %c0_15 = arith.constant 0 : index
    %24 = vector.load %arg6[%c0_14, %c0_15] : memref<512x1024xbf16, #tpu.memory_space<vmem>>, vector<512x1024xbf16>
    %cst_16 = arith.constant dense<0.000000e+00> : vector<8x1024xf32>
    %25 = tpu.matmul %23, %24, %cst_16 {dimension_numbers = #tpu.dot_dimension_numbers<[1], [0], [0], [1], [0, 0, 1, 1], [], []>} : vector<8x512xbf16>, vector<512x1024xbf16>, vector<8x1024xf32> -> vector<8x1024xf32>
    %c0_17 = arith.constant 0 : index
    %c0_18 = arith.constant 0 : index
    %26 = vector.load %arg7[%c0_17, %c0_18] : memref<1x1024xf32, #tpu.memory_space<vmem>>, vector<1x1024xf32>
    %27 = vector.broadcast %26 : vector<1x1024xf32> to vector<8x1024xf32>
    %28 = arith.addf %25, %27 : vector<8x1024xf32>
    %cst_19 = arith.constant 0.000000e+00 : f32
    %29 = vector.broadcast %cst_19 : f32 to vector<8x1024xf32>
    %30 = arith.cmpf ogt, %28, %29 : vector<8x1024xf32>
    %cst_20 = arith.constant 2.000000e-01 : f32
    %31 = vector.broadcast %cst_20 : f32 to vector<8x1024xf32>
    %32 = arith.mulf %31, %28 : vector<8x1024xf32>
    %33 = arith.select %30, %28, %32 : vector<8x1024xi1>, vector<8x1024xf32>
    %34 = arith.truncf %33 : vector<8x1024xf32> to vector<8x1024xbf16>
    %c0_21 = arith.constant 0 : index
    %c0_22 = arith.constant 0 : index
    %35 = vector.load %arg8[%c0_21, %c0_22] : memref<1024x128xbf16, #tpu.memory_space<vmem>>, vector<1024x128xbf16>
    %cst_23 = arith.constant dense<0.000000e+00> : vector<8x128xf32>
    %36 = tpu.matmul %34, %35, %cst_23 {dimension_numbers = #tpu.dot_dimension_numbers<[1], [0], [0], [1], [0, 0, 1, 1], [], []>} : vector<8x1024xbf16>, vector<1024x128xbf16>, vector<8x128xf32> -> vector<8x128xf32>
    %c0_24 = arith.constant 0 : index
    %c0_25 = arith.constant 0 : index
    %37 = vector.load %arg9[%c0_24, %c0_25] : memref<1x128xf32, #tpu.memory_space<vmem>>, vector<1x128xf32>
    %38 = vector.broadcast %37 : vector<1x128xf32> to vector<8x128xf32>
    %39 = arith.addf %36, %38 : vector<8x128xf32>
    %40 = math.tanh %39 : vector<8x128xf32>
    %c0_26 = arith.constant 0 : index
    %c0_27 = arith.constant 0 : index
    %41 = vector.load %arg10[%c0_26, %c0_27] : memref<8x128xf32, #tpu.memory_space<vmem>>, vector<8x128xf32>
    tpu.vector_store %arg10[%c0_26, %c0_27], %40 {strides = array<i32>} : memref<8x128xf32, #tpu.memory_space<vmem>>, vector<8x128xf32>,
    return
  }
  func.func @transform_0(%arg0: i32) -> (i32, i32) {
    %c0_i32 = arith.constant 0 : i32
    %c0_i32_0 = arith.constant 0 : i32
    return %arg0, %c0_i32 : i32, i32
  }
  func.func @transform_1(%arg0: i32) -> (i32, i32) {
    %c0_i32 = arith.constant 0 : i32
    %c0_i32_0 = arith.constant 0 : i32
    %c0_i32_1 = arith.constant 0 : i32
    return %c0_i32, %c0_i32_0 : i32, i32
  }
  func.func @transform_2(%arg0: i32) -> (i32, i32) {
    %c0_i32 = arith.constant 0 : i32
    %c0_i32_0 = arith.constant 0 : i32
    %c0_i32_1 = arith.constant 0 : i32
    return %c0_i32, %c0_i32_0 : i32, i32
  }
  func.func @transform_3(%arg0: i32) -> (i32, i32) {
    %c0_i32 = arith.constant 0 : i32
    %c0_i32_0 = arith.constant 0 : i32
    %c0_i32_1 = arith.constant 0 : i32
    return %c0_i32, %c0_i32_0 : i32, i32
  }
  func.func @transform_4(%arg0: i32) -> (i32, i32) {
    %c0_i32 = arith.constant 0 : i32
    %c0_i32_0 = arith.constant 0 : i32
    %c0_i32_1 = arith.constant 0 : i32
    return %c0_i32, %c0_i32_0 : i32, i32
  }
  func.func @transform_5(%arg0: i32) -> (i32, i32) {
    %c0_i32 = arith.constant 0 : i32
    %c0_i32_0 = arith.constant 0 : i32
    %c0_i32_1 = arith.constant 0 : i32
    return %c0_i32, %c0_i32_0 : i32, i32
  }
  func.func @transform_6(%arg0: i32) -> (i32, i32) {
    %c0_i32 = arith.constant 0 : i32
    %c0_i32_0 = arith.constant 0 : i32
    %c0_i32_1 = arith.constant 0 : i32
    return %c0_i32, %c0_i32_0 : i32, i32
  }
  func.func @transform_7(%arg0: i32) -> (i32, i32) {
    %c0_i32 = arith.constant 0 : i32
    %c0_i32_0 = arith.constant 0 : i32
    %c0_i32_1 = arith.constant 0 : i32
    return %c0_i32, %c0_i32_0 : i32, i32
  }
  func.func @transform_8(%arg0: i32) -> (i32, i32) {
    %c0_i32 = arith.constant 0 : i32
    %c0_i32_0 = arith.constant 0 : i32
    %c0_i32_1 = arith.constant 0 : i32
    return %c0_i32, %c0_i32_0 : i32, i32
  }
  func.func @transform_9(%arg0: i32) -> (i32, i32) {
    %c0_i32 = arith.constant 0 : i32
    %c0_i32_0 = arith.constant 0 : i32
    return %arg0, %c0_i32 : i32, i32
  }
}

</mosaic_0001>

<llo_original>
// kernel: tpu_custom_call.1
$region0: #{tpu_custom_call.1}
  #allocation0 [shape = 'u32[]', space=smem, size = 0x4, offset = 0x4, fixed_abs, tag = 'smem constant byte address 0x4 - core index']
  #allocation1 [shape = 'u32[144,128]{1,0:T(1,128)}', space=vmem, size = 0x12000, scoped, tag = 'internal scratch']
  %s0 = inlined_call_operand.hbm [shape: f32[8,8], index: 0, kind: input, shape index: {}]
  %s1 = inlined_call_operand.hbm [shape: bf16[8,256], index: 1, kind: input, shape index: {}]
  %s2 = inlined_call_operand.vmem [shape: f32[1,256], index: 2, kind: input, shape index: {}]
  %s3 = inlined_call_operand.hbm [shape: bf16[256,512], index: 3, kind: input, shape index: {}]
  %s4 = inlined_call_operand.vmem [shape: f32[1,512], index: 4, kind: input, shape index: {}]
  %s5 = inlined_call_operand.hbm [shape: bf16[512,1024], index: 5, kind: input, shape index: {}]
  %s6 = inlined_call_operand.vmem [shape: f32[1,1024], index: 6, kind: input, shape index: {}]
  %s7 = inlined_call_operand.hbm [shape: bf16[1024,128], index: 7, kind: input, shape index: {}]
  %s8 = inlined_call_operand.vmem [shape: f32[1,128], index: 8, kind: input, shape index: {}]
  %s9 = inlined_call_operand.hbm [shape: f32[8,128], index: 9, kind: output, shape index: {}]
  %s10 = sld [smem:[#allocation0]]
  $region66: #{tpu_custom_call.1} parent=0
    _
  %s12 = ssub.s32 1, %s10
  %s13 = scalar_select 0, %s12, %s10
  $region1: #{tpu_custom_call.1} parent=0
    #allocation2 [shape = 'u8[4096]{0}', space=vmem, size = 0x1000, scoped, tag = 'input window, operand 0, single buffered']
    #allocation3 [shape = 's32[1]{0}', space=sflag, size = 0x4, scoped, tag = 'scoped memory for tpu_custom_call.1']
    #allocation4 [shape = 's32[1]{0}', space=sflag, size = 0x4, scoped, tag = 'scoped memory for tpu_custom_call.1']
    #allocation5 [shape = 'u8[4096]{0}', space=vmem, size = 0x1000, scoped, tag = 'input window, operand 1, single buffered']
    #allocation6 [shape = 's32[1]{0}', space=sflag, size = 0x4, scoped, tag = 'scoped memory for tpu_custom_call.1']
    #allocation7 [shape = 'u8[262144]{0}', space=vmem, size = 0x40000, scoped, tag = 'input window, operand 3, single buffered']
    #allocation8 [shape = 'u8[1048576]{0}', space=vmem, size = 0x100000, scoped, tag = 'input window, operand 5, single buffered']
    #allocation9 [shape = 's32[1]{0}', space=sflag, size = 0x4, scoped, tag = 'scoped memory for tpu_custom_call.1']
    #allocation10 [shape = 'u8[262144]{0}', space=vmem, size = 0x40000, scoped, tag = 'input window, operand 7, single buffered']
    #allocation11 [shape = 'u8[4096]{0}', space=vmem, size = 0x1000, scoped, tag = 'output window, operand 0, single buffered']
    %14 = vsyncpa [#allocation3], 0
    %15 = vsyncpa [#allocation6], 0
    %16 = vsyncpa [#allocation9], 0
    %17 = vsyncpa [#allocation4], 0
    // Predicated region
    $region2: #{tpu_custom_call.1} parent=1 // pred_check
      _
    $region3: #{tpu_custom_call.1} parent=1 // pred_check_branch
      %19 = sbr.rel (0) target = $region5
    $region4: #{tpu_custom_call.1} parent=1 // pred_region
      %s21 = ssub.s32 128, 128
      %22 = vsyncadd [#allocation3], %s21
      %s24 = sshll.u32 [#allocation2], 4
      %s25 = int_to_ptr.vmem [resolvable:$true] %s24
      %27 = dma.hbm_to_vmem [thread:$0]  %s0, 128, %s25, [#allocation3]
    $region5: #{tpu_custom_call.1} parent=1 // pred_fallthru
      _
    // Predicated region
    $region6: #{tpu_custom_call.1} parent=1 // pred_check
      _
    $region7: #{tpu_custom_call.1} parent=1 // pred_check_branch
      %29 = sbr.rel (0) target = $region9
    $region8: #{tpu_custom_call.1} parent=1 // pred_region
      %s31 = ssub.s32 128, 128
      %32 = vsyncadd [#allocation6], %s31
      %s34 = sshll.u32 [#allocation5], 4
      %s35 = int_to_ptr.vmem [resolvable:$true] %s34
      %37 = dma.hbm_to_vmem [thread:$0]  %s1, 128, %s35, [#allocation6]
    $region9: #{tpu_custom_call.1} parent=1 // pred_fallthru
      _
    // Predicated region
    $region10: #{tpu_custom_call.1} parent=1 // pred_check
      _
    $region11: #{tpu_custom_call.1} parent=1 // pred_check_branch
      %39 = sbr.rel (0) target = $region13
    $region12: #{tpu_custom_call.1} parent=1 // pred_region
      _
    $region13: #{tpu_custom_call.1} parent=1 // pred_fallthru
      _
    // Predicated region
    $region14: #{tpu_custom_call.1} parent=1 // pred_check
      _
    $region15: #{tpu_custom_call.1} parent=1 // pred_check_branch
      %41 = sbr.rel (0) target = $region17
    $region16: #{tpu_custom_call.1} parent=1 // pred_region
      %s43 = ssub.s32 8192, 8192
      %44 = vsyncadd [#allocation6], %s43
      %s45 = sshll.u32 [#allocation7], 4
      %s46 = int_to_ptr.vmem [resolvable:$true] %s45
      %51 = dma.hbm_to_vmem [thread:$0]  %s3, 8192, %s46, [#allocation6], 256, 256, 16
    $region17: #{tpu_custom_call.1} parent=1 // pred_fallthru
      _
    // Predicated region
    $region18: #{tpu_custom_call.1} parent=1 // pred_check
      _
    $region19: #{tpu_custom_call.1} parent=1 // pred_check_branch
      %53 = sbr.rel (0) target = $region21
    $region20: #{tpu_custom_call.1} parent=1 // pred_region
      _
    $region21: #{tpu_custom_call.1} parent=1 // pred_fallthru
      _
    // Predicated region
    $region22: #{tpu_custom_call.1} parent=1 // pred_check
      _
    $region23: #{tpu_custom_call.1} parent=1 // pred_check_branch
      %55 = sbr.rel (0) target = $region25
    $region24: #{tpu_custom_call.1} parent=1 // pred_region
      %s57 = ssub.s32 32768, 32768
      %58 = vsyncadd [#allocation9], %s57
      %s59 = sshll.u32 [#allocation8], 4
      %s60 = int_to_ptr.vmem [resolvable:$true] %s59
      %65 = dma.hbm_to_vmem [thread:$0]  %s5, 32768, %s60, [#allocation9], 512, 512, 32
    $region25: #{tpu_custom_call.1} parent=1 // pred_fallthru
      _
    // Predicated region
    $region26: #{tpu_custom_call.1} parent=1 // pred_check
      _
    $region27: #{tpu_custom_call.1} parent=1 // pred_check_branch
      %67 = sbr.rel (0) target = $region29
    $region28: #{tpu_custom_call.1} parent=1 // pred_region
      _
    $region29: #{tpu_custom_call.1} parent=1 // pred_fallthru
      _
    // Predicated region
    $region30: #{tpu_custom_call.1} parent=1 // pred_check
      _
    $region31: #{tpu_custom_call.1} parent=1 // pred_check_branch
      %69 = sbr.rel (0) target = $region33
    $region32: #{tpu_custom_call.1} parent=1 // pred_region
      %s71 = ssub.s32 8192, 8192
      %72 = vsyncadd [#allocation9], %s71
      %s73 = sshll.u32 [#allocation10], 4
      %s74 = int_to_ptr.vmem [resolvable:$true] %s73
      %79 = dma.hbm_to_vmem [thread:$0]  %s7, 8192, %s74, [#allocation9], 64, 64, 4
    $region33: #{tpu_custom_call.1} parent=1 // pred_fallthru
      _
    // Predicated region
    $region34: #{tpu_custom_call.1} parent=1 // pred_check
      _
    $region35: #{tpu_custom_call.1} parent=1 // pred_check_branch
      %81 = sbr.rel (0) target = $region37
    $region36: #{tpu_custom_call.1} parent=1 // pred_region
      _
    $region37: #{tpu_custom_call.1} parent=1 // pred_fallthru
      _
    // Predicated region
    $region38: #{tpu_custom_call.1} parent=1 // pred_check
      _
    $region39: #{tpu_custom_call.1} parent=1 // pred_check_branch
      %83 = sbr.rel (0) target = $region41
    $region40: #{tpu_custom_call.1} parent=1 // pred_region
      %84 = dma.done [#allocation3], 128
    $region41: #{tpu_custom_call.1} parent=1 // pred_fallthru
      _
    // Predicated region
    $region42: #{tpu_custom_call.1} parent=1 // pred_check
      _
    $region43: #{tpu_custom_call.1} parent=1 // pred_check_branch
      %86 = sbr.rel (0) target = $region45
    $region44: #{tpu_custom_call.1} parent=1 // pred_region
      %87 = dma.done [#allocation6], 128
    $region45: #{tpu_custom_call.1} parent=1 // pred_fallthru
      _
    // Predicated region
    $region46: #{tpu_custom_call.1} parent=1 // pred_check
      _
    $region47: #{tpu_custom_call.1} parent=1 // pred_check_branch
      %89 = sbr.rel (0) target = $region49
    $region48: #{tpu_custom_call.1} parent=1 // pred_region
      %90 = dma.done [#allocation6], 8192
    $region49: #{tpu_custom_call.1} parent=1 // pred_fallthru
      _
    // Predicated region
    $region50: #{tpu_custom_call.1} parent=1 // pred_check
      _
    $region51: #{tpu_custom_call.1} parent=1 // pred_check_branch
      %92 = sbr.rel (0) target = $region53
    $region52: #{tpu_custom_call.1} parent=1 // pred_region
      %93 = dma.done [#allocation9], 32768
    $region53: #{tpu_custom_call.1} parent=1 // pred_fallthru
      _
    // Predicated region
    $region54: #{tpu_custom_call.1} parent=1 // pred_check
      _
    $region55: #{tpu_custom_call.1} parent=1 // pred_check_branch
      %95 = sbr.rel (0) target = $region57
    $region56: #{tpu_custom_call.1} parent=1 // pred_region
      %96 = dma.done [#allocation9], 8192
    $region57: #{tpu_custom_call.1} parent=1 // pred_fallthru
      _
    %v98 = vld [vmem:[#allocation2] sm:$0xff]
    %v99 = vpack.c.bf16 %v98, %v98
    %v100 = vld [vmem:[#allocation5] sm:$0xff]
    %v101 = vld [vmem:[%s2] sm:$0x3]
    %v103 = vlaneseq
    %v104 = vshrl.u32 %v103, 7
    %v105 = vsub.s32 0, %v104
    %v106 = vrot.slane %v101, %v105
    %v107 = vlaneseq
    %v108 = vshrl.u32 %v107, 7
    %v109 = vsub.s32 1, %v108
    %v110 = vrot.slane %v101, %v109
    %v114 = vunpack.c.l.b16 %v100
    %v115 = vunpack.c.h.b16 %v100
    %v116 = vpack.c.b16 %v114, %v114
    %v117 = vpack.c.b16 %v115, %v115
    %vm118 = vcmask 64512
    %v120 = vsel %vm118, %v99, 0
    %vm122 = vcmask 1043456
    %v124 = vsel %vm122, %v116, 0
    %v127 = vsel %vm122, %v117, 0
    %129 = vmatprep.subr.bf16.mxu0 %v127
    %130 = vmatpush1.bf16.msra.mxu0 %v124
    %131 = vmatprep.subr.bf16.mxu0 0
    %132 = vmatpush1.bf16.msra.mxu0 0
    %133 = vmatprep.subr.bf16.mxu0 0
    %134 = vmatpush1.bf16.msra.mxu0 0
    %135 = vmatprep.subr.bf16.mxu0 0
    %136 = vmatpush1.bf16.msra.mxu0 0
    %137 = vmatprep.subr.bf16.mxu0 0
    %138 = vmatpush1.bf16.msra.mxu0 0
    %139 = vmatprep.subr.bf16.mxu0 0
    %140 = vmatpush1.bf16.msra.mxu0 0
    %141 = vmatprep.subr.bf16.mxu0 0
    %142 = vmatpush1.bf16.msra.mxu0 0
    %143 = vmatprep.subr.bf16.mxu0 0
    %144 = vmatpush1.bf16.msra.mxu0 0
    %145 = vmatprep.subr.bf16.mxu0 0
    %146 = vmatpush1.bf16.msra.mxu0 0
    %147 = vmatprep.subr.bf16.mxu0 0
    %148 = vmatpush1.bf16.msra.mxu0 0
    %149 = vmatprep.subr.bf16.mxu0 0
    %150 = vmatpush1.bf16.msra.mxu0 0
    %151 = vmatprep.subr.bf16.mxu0 0
    %152 = vmatpush1.bf16.msra.mxu0 0
    %153 = vmatprep.subr.bf16.mxu0 0
    %154 = vmatpush1.bf16.msra.mxu0 0
    %155 = vmatprep.subr.bf16.mxu0 0
    %156 = vmatpush1.bf16.msra.mxu0 0
    %157 = vmatprep.subr.bf16.mxu0 0
    %158 = vmatpush1.bf16.msra.mxu0 0
    %159 = vmatprep.subr.bf16.mxu0 0
    %160 = vmatpush1.bf16.msra.mxu0 0
    %161 = vmatprep.mubr.bf16.mxu0 0
    %162 = vmatmul.mubr.bf16.gmra.mrb[0].mxu0 %v120
    %v163 = vpop.f32.mrb[0].mxu0
    %v164 = vadd.f32 %v106, %v163
    %v165 = vpop.f32.mrb[0].mxu0
    %v166 = vadd.f32 %v110, %v165
    %v167 = vpop.f32.mrb[0].mxu0
    %v168 = vpop.f32.mrb[0].mxu0
    %169 = vdwg.mxu0
    %vm170 = vcmp.gt.f32.partialorder %v164, 0.0
    %vm171 = vcmp.gt.f32.partialorder %v166, 0.0
    %v172 = vmul.f32 %v164, 0.2
    %v173 = vmul.f32 %v166, 0.2
    %v174 = vsel %vm170, %v164, %v172
    %v175 = vsel %vm171, %v166, %v173
    %v176 = vpack.c.bf16 %v174, %v174
    %v177 = vpack.c.bf16 %v175, %v175
    %v178 = vld [vmem:[#allocation7] sm:$0xff]
    %v179 = vld [vmem:[#allocation7 + $0x8] sm:$0xff]
    %v180 = vld [vmem:[#allocation7 + $0x10] sm:$0xff]
    %v181 = vld [vmem:[#allocation7 + $0x18] sm:$0xff]
    %v182 = vld [vmem:[#allocation7 + $0x20] sm:$0xff]
    %v183 = vld [vmem:[#allocation7 + $0x28] sm:$0xff]
    %v184 = vld [vmem:[#allocation7 + $0x30] sm:$0xff]
    %v185 = vld [vmem:[#allocation7 + $0x38] sm:$0xff]
    %v186 = vld [vmem:[#allocation7 + $0x40] sm:$0xff]
    %v187 = vld [vmem:[#allocation7 + $0x48] sm:$0xff]
    %v188 = vld [vmem:[#allocation7 + $0x50] sm:$0xff]
    %v189 = vld [vmem:[#allocation7 + $0x58] sm:$0xff]
    %v190 = vld [vmem:[#allocation7 + $0x60] sm:$0xff]
    %v191 = vld [vmem:[#allocation7 + $0x68] sm:$0xff]
    %v192 = vld [vmem:[#allocation7 + $0x70] sm:$0xff]
    %v193 = vld [vmem:[#allocation7 + $0x78] sm:$0xff]
    %v194 = vld [vmem:[#allocation7 + $0x80] sm:$0xff]
    %v195 = vld [vmem:[#allocation7 + $0x88] sm:$0xff]
    %v196 = vld [vmem:[#allocation7 + $0x90] sm:$0xff]
    %v197 = vld [vmem:[#allocation7 + $0x98] sm:$0xff]
    %v198 = vld [vmem:[#allocation7 + $0xa0] sm:$0xff]
    %v199 = vld [vmem:[#allocation7 + $0xa8] sm:$0xff]
    %v200 = vld [vmem:[#allocation7 + $0xb0] sm:$0xff]
    %v201 = vld [vmem:[#allocation7 + $0xb8] sm:$0xff]
    %v202 = vld [vmem:[#allocation7 + $0xc0] sm:$0xff]
    %v203 = vld [vmem:[#allocation7 + $0xc8] sm:$0xff]
    %v204 = vld [vmem:[#allocation7 + $0xd0] sm:$0xff]
    %v205 = vld [vmem:[#allocation7 + $0xd8] sm:$0xff]
    %v206 = vld [vmem:[#allocation7 + $0xe0] sm:$0xff]
    %v207 = vld [vmem:[#allocation7 + $0xe8] sm:$0xff]
    %v208 = vld [vmem:[#allocation7 + $0xf0] sm:$0xff]
    %v209 = vld [vmem:[#allocation7 + $0xf8] sm:$0xff]
    %v210 = vld [vmem:[#allocation7 + $0x100] sm:$0xff]
    %v211 = vld [vmem:[#allocation7 + $0x108] sm:$0xff]
    %v212 = vld [vmem:[#allocation7 + $0x110] sm:$0xff]
    %v213 = vld [vmem:[#allocation7 + $0x118] sm:$0xff]
    %v214 = vld [vmem:[#allocation7 + $0x120] sm:$0xff]
    %v215 = vld [vmem:[#allocation7 + $0x128] sm:$0xff]
    %v216 = vld [vmem:[#allocation7 + $0x130] sm:$0xff]
    %v217 = vld [vmem:[#allocation7 + $0x138] sm:$0xff]
    %v218 = vld [vmem:[#allocation7 + $0x140] sm:$0xff]
    %v219 = vld [vmem:[#allocation7 + $0x148] sm:$0xff]
    %v220 = vld [vmem:[#allocation7 + $0x150] sm:$0xff]
    %v221 = vld [vmem:[#allocation7 + $0x158] sm:$0xff]
    %v222 = vld [vmem:[#allocation7 + $0x160] sm:$0xff]
    %v223 = vld [vmem:[#allocation7 + $0x168] sm:$0xff]
    %v224 = vld [vmem:[#allocation7 + $0x170] sm:$0xff]
    %v225 = vld [vmem:[#allocation7 + $0x178] sm:$0xff]
    %v226 = vld [vmem:[#allocation7 + $0x180] sm:$0xff]
    %v227 = vld [vmem:[#allocation7 + $0x188] sm:$0xff]
    %v228 = vld [vmem:[#allocation7 + $0x190] sm:$0xff]
    %v229 = vld [vmem:[#allocation7 + $0x198] sm:$0xff]
    %v230 = vld [vmem:[#allocation7 + $0x1a0] sm:$0xff]
    %v231 = vld [vmem:[#allocation7 + $0x1a8] sm:$0xff]
    %v232 = vld [vmem:[#allocation7 + $0x1b0] sm:$0xff]
    %v233 = vld [vmem:[#allocation7 + $0x1b8] sm:$0xff]
    %v234 = vld [vmem:[#allocation7 + $0x1c0] sm:$0xff]
    %v235 = vld [vmem:[#allocation7 + $0x1c8] sm:$0xff]
    %v236 = vld [vmem:[#allocation7 + $0x1d0] sm:$0xff]
    %v237 = vld [vmem:[#allocation7 + $0x1d8] sm:$0xff]
    %v238 = vld [vmem:[#allocation7 + $0x1e0] sm:$0xff]
    %v239 = vld [vmem:[#allocation7 + $0x1e8] sm:$0xff]
    %v240 = vld [vmem:[#allocation7 + $0x1f0] sm:$0xff]
    %v241 = vld [vmem:[#allocation7 + $0x1f8] sm:$0xff]
    %v242 = vld [vmem:[%s4] sm:$0xf]
    %v244 = vlaneseq
    %v245 = vshrl.u32 %v244, 7
    %v246 = vsub.s32 0, %v245
    %v247 = vrot.slane %v242, %v246
    %v248 = vlaneseq
    %v249 = vshrl.u32 %v248, 7
    %v250 = vsub.s32 1, %v249
    %v251 = vrot.slane %v242, %v250
    %v252 = vlaneseq
    %v253 = vshrl.u32 %v252, 7
    %v254 = vsub.s32 2, %v253
    %v255 = vrot.slane %v242, %v254
    %v256 = vlaneseq
    %v257 = vshrl.u32 %v256, 7
    %v258 = vsub.s32 3, %v257
    %v259 = vrot.slane %v242, %v258
    %v328 = vunpack.c.l.b16 %v178
    %v329 = vunpack.c.h.b16 %v178
    %v330 = vunpack.c.l.b16 %v179
    %v331 = vunpack.c.h.b16 %v179
    %v332 = vunpack.c.l.b16 %v180
    %v333 = vunpack.c.h.b16 %v180
    %v334 = vunpack.c.l.b16 %v181
    %v335 = vunpack.c.h.b16 %v181
    %v336 = vunpack.c.l.b16 %v182
    %v337 = vunpack.c.h.b16 %v182
    %v338 = vunpack.c.l.b16 %v183
    %v339 = vunpack.c.h.b16 %v183
    %v340 = vunpack.c.l.b16 %v184
    %v341 = vunpack.c.h.b16 %v184
    %v342 = vunpack.c.l.b16 %v185
    %v343 = vunpack.c.h.b16 %v185
    %v344 = vunpack.c.l.b16 %v186
    %v345 = vunpack.c.h.b16 %v186
    %v346 = vunpack.c.l.b16 %v187
    %v347 = vunpack.c.h.b16 %v187
    %v348 = vunpack.c.l.b16 %v188
    %v349 = vunpack.c.h.b16 %v188
    %v350 = vunpack.c.l.b16 %v189
    %v351 = vunpack.c.h.b16 %v189
    %v352 = vunpack.c.l.b16 %v190
    %v353 = vunpack.c.h.b16 %v190
    %v354 = vunpack.c.l.b16 %v191
    %v355 = vunpack.c.h.b16 %v191
    %v356 = vunpack.c.l.b16 %v192
    %v357 = vunpack.c.h.b16 %v192
    %v358 = vunpack.c.l.b16 %v193
    %v359 = vunpack.c.h.b16 %v193
    %v360 = vunpack.c.l.b16 %v194
    %v361 = vunpack.c.h.b16 %v194
    %v362 = vunpack.c.l.b16 %v195
    %v363 = vunpack.c.h.b16 %v195
    %v364 = vunpack.c.l.b16 %v196
    %v365 = vunpack.c.h.b16 %v196
    %v366 = vunpack.c.l.b16 %v197
    %v367 = vunpack.c.h.b16 %v197
    %v368 = vunpack.c.l.b16 %v198
    %v369 = vunpack.c.h.b16 %v198
    %v370 = vunpack.c.l.b16 %v199
    %v371 = vunpack.c.h.b16 %v199
    %v372 = vunpack.c.l.b16 %v200
    %v373 = vunpack.c.h.b16 %v200
    %v374 = vunpack.c.l.b16 %v201
    %v375 = vunpack.c.h.b16 %v201
    %v376 = vunpack.c.l.b16 %v202
    %v377 = vunpack.c.h.b16 %v202
    %v378 = vunpack.c.l.b16 %v203
    %v379 = vunpack.c.h.b16 %v203
    %v380 = vunpack.c.l.b16 %v204
    %v381 = vunpack.c.h.b16 %v204
    %v382 = vunpack.c.l.b16 %v205
    %v383 = vunpack.c.h.b16 %v205
    %v384 = vunpack.c.l.b16 %v206
    %v385 = vunpack.c.h.b16 %v206
    %v386 = vunpack.c.l.b16 %v207
    %v387 = vunpack.c.h.b16 %v207
    %v388 = vunpack.c.l.b16 %v208
    %v389 = vunpack.c.h.b16 %v208
    %v390 = vunpack.c.l.b16 %v209
    %v391 = vunpack.c.h.b16 %v209
    %v392 = vunpack.c.l.b16 %v210
    %v393 = vunpack.c.h.b16 %v210
    %v394 = vunpack.c.l.b16 %v211
    %v395 = vunpack.c.h.b16 %v211
    %v396 = vunpack.c.l.b16 %v212
    %v397 = vunpack.c.h.b16 %v212
    %v398 = vunpack.c.l.b16 %v213
    %v399 = vunpack.c.h.b16 %v213
    %v400 = vunpack.c.l.b16 %v214
    %v401 = vunpack.c.h.b16 %v214
    %v402 = vunpack.c.l.b16 %v215
    %v403 = vunpack.c.h.b16 %v215
    %v404 = vunpack.c.l.b16 %v216
    %v405 = vunpack.c.h.b16 %v216
    %v406 = vunpack.c.l.b16 %v217
    %v407 = vunpack.c.h.b16 %v217
    %v408 = vunpack.c.l.b16 %v218
    %v409 = vunpack.c.h.b16 %v218
    %v410 = vunpack.c.l.b16 %v219
    %v411 = vunpack.c.h.b16 %v219
    %v412 = vunpack.c.l.b16 %v220
    %v413 = vunpack.c.h.b16 %v220
    %v414 = vunpack.c.l.b16 %v221
    %v415 = vunpack.c.h.b16 %v221
    %v416 = vunpack.c.l.b16 %v222
    %v417 = vunpack.c.h.b16 %v222
    %v418 = vunpack.c.l.b16 %v223
    %v419 = vunpack.c.h.b16 %v223
    %v420 = vunpack.c.l.b16 %v224
    %v421 = vunpack.c.h.b16 %v224
    %v422 = vunpack.c.l.b16 %v225
    %v423 = vunpack.c.h.b16 %v225
    %v424 = vunpack.c.l.b16 %v226
    %v425 = vunpack.c.h.b16 %v226
    %v426 = vunpack.c.l.b16 %v227
    %v427 = vunpack.c.h.b16 %v227
    %v428 = vunpack.c.l.b16 %v228
    %v429 = vunpack.c.h.b16 %v228
    %v430 = vunpack.c.l.b16 %v229
    %v431 = vunpack.c.h.b16 %v229
    %v432 = vunpack.c.l.b16 %v230
    %v433 = vunpack.c.h.b16 %v230
    %v434 = vunpack.c.l.b16 %v231
    %v435 = vunpack.c.h.b16 %v231
    %v436 = vunpack.c.l.b16 %v232
    %v437 = vunpack.c.h.b16 %v232
    %v438 = vunpack.c.l.b16 %v233
    %v439 = vunpack.c.h.b16 %v233
    %v440 = vunpack.c.l.b16 %v234
    %v441 = vunpack.c.h.b16 %v234
    %v442 = vunpack.c.l.b16 %v235
    %v443 = vunpack.c.h.b16 %v235
    %v444 = vunpack.c.l.b16 %v236
    %v445 = vunpack.c.h.b16 %v236
    %v446 = vunpack.c.l.b16 %v237
    %v447 = vunpack.c.h.b16 %v237
    %v448 = vunpack.c.l.b16 %v238
    %v449 = vunpack.c.h.b16 %v238
    %v450 = vunpack.c.l.b16 %v239
    %v451 = vunpack.c.h.b16 %v239
    %v452 = vunpack.c.l.b16 %v240
    %v453 = vunpack.c.h.b16 %v240
    %v454 = vunpack.c.l.b16 %v241
    %v455 = vunpack.c.h.b16 %v241
    %v456 = vpack.c.b16 %v332, %v328
    %v457 = vpack.c.b16 %v333, %v329
    %v458 = vpack.c.b16 %v334, %v330
    %v459 = vpack.c.b16 %v335, %v331
    %v460 = vpack.c.b16 %v340, %v336
    %v461 = vpack.c.b16 %v341, %v337
    %v462 = vpack.c.b16 %v342, %v338
    %v463 = vpack.c.b16 %v343, %v339
    %v464 = vpack.c.b16 %v348, %v344
    %v465 = vpack.c.b16 %v349, %v345
    %v466 = vpack.c.b16 %v350, %v346
    %v467 = vpack.c.b16 %v351, %v347
    %v468 = vpack.c.b16 %v356, %v352
    %v469 = vpack.c.b16 %v357, %v353
    %v470 = vpack.c.b16 %v358, %v354
    %v471 = vpack.c.b16 %v359, %v355
    %v472 = vpack.c.b16 %v364, %v360
    %v473 = vpack.c.b16 %v365, %v361
    %v474 = vpack.c.b16 %v366, %v362
    %v475 = vpack.c.b16 %v367, %v363
    %v476 = vpack.c.b16 %v372, %v368
    %v477 = vpack.c.b16 %v373, %v369
    %v478 = vpack.c.b16 %v374, %v370
    %v479 = vpack.c.b16 %v375, %v371
    %v480 = vpack.c.b16 %v380, %v376
    %v481 = vpack.c.b16 %v381, %v377
    %v482 = vpack.c.b16 %v382, %v378
    %v483 = vpack.c.b16 %v383, %v379
    %v484 = vpack.c.b16 %v388, %v384
    %v485 = vpack.c.b16 %v389, %v385
    %v486 = vpack.c.b16 %v390, %v386
    %v487 = vpack.c.b16 %v391, %v387
    %v488 = vpack.c.b16 %v396, %v392
    %v489 = vpack.c.b16 %v397, %v393
    %v490 = vpack.c.b16 %v398, %v394
    %v491 = vpack.c.b16 %v399, %v395
    %v492 = vpack.c.b16 %v404, %v400
    %v493 = vpack.c.b16 %v405, %v401
    %v494 = vpack.c.b16 %v406, %v402
    %v495 = vpack.c.b16 %v407, %v403
    %v496 = vpack.c.b16 %v412, %v408
    %v497 = vpack.c.b16 %v413, %v409
    %v498 = vpack.c.b16 %v414, %v410
    %v499 = vpack.c.b16 %v415, %v411
    %v500 = vpack.c.b16 %v420, %v416
    %v501 = vpack.c.b16 %v421, %v417
    %v502 = vpack.c.b16 %v422, %v418
    %v503 = vpack.c.b16 %v423, %v419
    %v504 = vpack.c.b16 %v428, %v424
    %v505 = vpack.c.b16 %v429, %v425
    %v506 = vpack.c.b16 %v430, %v426
    %v507 = vpack.c.b16 %v431, %v427
    %v508 = vpack.c.b16 %v436, %v432
    %v509 = vpack.c.b16 %v437, %v433
    %v510 = vpack.c.b16 %v438, %v434
    %v511 = vpack.c.b16 %v439, %v435
    %v512 = vpack.c.b16 %v444, %v440
    %v513 = vpack.c.b16 %v445, %v441
    %v514 = vpack.c.b16 %v446, %v442
    %v515 = vpack.c.b16 %v447, %v443
    %v516 = vpack.c.b16 %v452, %v448
    %v517 = vpack.c.b16 %v453, %v449
    %v518 = vpack.c.b16 %v454, %v450
    %v519 = vpack.c.b16 %v455, %v451
    %584 = vmatprep.subr.bf16.mxu0 %v457
    %585 = vmatpush1.bf16.msra.mxu0 %v456
    %586 = vmatprep.subr.bf16.mxu0 %v461
    %587 = vmatpush1.bf16.msra.mxu0 %v460
    %588 = vmatprep.subr.bf16.mxu0 %v465
    %589 = vmatpush1.bf16.msra.mxu0 %v464
    %590 = vmatprep.subr.bf16.mxu0 %v469
    %591 = vmatpush1.bf16.msra.mxu0 %v468
    %592 = vmatprep.subr.bf16.mxu0 %v473
    %593 = vmatpush1.bf16.msra.mxu0 %v472
    %594 = vmatprep.subr.bf16.mxu0 %v477
    %595 = vmatpush1.bf16.msra.mxu0 %v476
    %596 = vmatprep.subr.bf16.mxu0 %v481
    %597 = vmatpush1.bf16.msra.mxu0 %v480
    %598 = vmatprep.subr.bf16.mxu0 %v485
    %599 = vmatpush1.bf16.msra.mxu0 %v484
    %600 = vmatprep.subr.bf16.mxu0 %v489
    %601 = vmatpush1.bf16.msra.mxu0 %v488
    %602 = vmatprep.subr.bf16.mxu0 %v493
    %603 = vmatpush1.bf16.msra.mxu0 %v492
    %604 = vmatprep.subr.bf16.mxu0 %v497
    %605 = vmatpush1.bf16.msra.mxu0 %v496
    %606 = vmatprep.subr.bf16.mxu0 %v501
    %607 = vmatpush1.bf16.msra.mxu0 %v500
    %608 = vmatprep.subr.bf16.mxu0 %v505
    %609 = vmatpush1.bf16.msra.mxu0 %v504
    %610 = vmatprep.subr.bf16.mxu0 %v509
    %611 = vmatpush1.bf16.msra.mxu0 %v508
    %612 = vmatprep.subr.bf16.mxu0 %v513
    %613 = vmatpush1.bf16.msra.mxu0 %v512
    %614 = vmatprep.subr.bf16.mxu0 %v517
    %615 = vmatpush1.bf16.msra.mxu0 %v516
    %616 = vmatprep.mubr.bf16.mxu0 %v177
    %617 = vmatmul.mubr.bf16.gmra.mrb[0].mxu0 %v176
    %v618 = vpop.f32.mrb[0].mxu0
    %v619 = vadd.f32 %v247, %v618
    %v620 = vpop.f32.mrb[0].mxu0
    %v621 = vadd.f32 %v251, %v620
    %v622 = vpop.f32.mrb[0].mxu0
    %v623 = vpop.f32.mrb[0].mxu0
    %624 = vdwg.mxu0
    %625 = vmatprep.subr.bf16.mxu0 %v459
    %626 = vmatpush1.bf16.msra.mxu0 %v458
    %627 = vmatprep.subr.bf16.mxu0 %v463
    %628 = vmatpush1.bf16.msra.mxu0 %v462
    %629 = vmatprep.subr.bf16.mxu0 %v467
    %630 = vmatpush1.bf16.msra.mxu0 %v466
    %631 = vmatprep.subr.bf16.mxu0 %v471
    %632 = vmatpush1.bf16.msra.mxu0 %v470
    %633 = vmatprep.subr.bf16.mxu0 %v475
    %634 = vmatpush1.bf16.msra.mxu0 %v474
    %635 = vmatprep.subr.bf16.mxu0 %v479
    %636 = vmatpush1.bf16.msra.mxu0 %v478
    %637 = vmatprep.subr.bf16.mxu0 %v483
    %638 = vmatpush1.bf16.msra.mxu0 %v482
    %639 = vmatprep.subr.bf16.mxu0 %v487
    %640 = vmatpush1.bf16.msra.mxu0 %v486
    %641 = vmatprep.subr.bf16.mxu0 %v491
    %642 = vmatpush1.bf16.msra.mxu0 %v490
    %643 = vmatprep.subr.bf16.mxu0 %v495
    %644 = vmatpush1.bf16.msra.mxu0 %v494
    %645 = vmatprep.subr.bf16.mxu0 %v499
    %646 = vmatpush1.bf16.msra.mxu0 %v498
    %647 = vmatprep.subr.bf16.mxu0 %v503
    %648 = vmatpush1.bf16.msra.mxu0 %v502
    %649 = vmatprep.subr.bf16.mxu0 %v507
    %650 = vmatpush1.bf16.msra.mxu0 %v506
    %651 = vmatprep.subr.bf16.mxu0 %v511
    %652 = vmatpush1.bf16.msra.mxu0 %v510
    %653 = vmatprep.subr.bf16.mxu0 %v515
    %654 = vmatpush1.bf16.msra.mxu0 %v514
    %655 = vmatprep.subr.bf16.mxu0 %v519
    %656 = vmatpush1.bf16.msra.mxu0 %v518
    %657 = vmatprep.mubr.bf16.mxu0 %v177
    %658 = vmatmul.mubr.bf16.gmra.mrb[0].mxu0 %v176
    %v659 = vpop.f32.mrb[0].mxu0
    %v660 = vadd.f32 %v255, %v659
    %v661 = vpop.f32.mrb[0].mxu0
    %v662 = vadd.f32 %v259, %v661
    %v663 = vpop.f32.mrb[0].mxu0
    %v664 = vpop.f32.mrb[0].mxu0
    %665 = vdwg.mxu0
    %vm666 = vcmp.gt.f32.partialorder %v619, 0.0
    %vm667 = vcmp.gt.f32.partialorder %v621, 0.0
    %vm668 = vcmp.gt.f32.partialorder %v660, 0.0
    %vm669 = vcmp.gt.f32.partialorder %v662, 0.0
    %v670 = vmul.f32 %v619, 0.2
    %v671 = vmul.f32 %v621, 0.2
    %v672 = vmul.f32 %v660, 0.2
    %v673 = vmul.f32 %v662, 0.2
    %v674 = vsel %vm666, %v619, %v670
    %v675 = vsel %vm667, %v621, %v671
    %v676 = vsel %vm668, %v660, %v672
    %v677 = vsel %vm669, %v662, %v673
    %v678 = vpack.c.bf16 %v674, %v674
    %v679 = vpack.c.bf16 %v675, %v675
    %v680 = vpack.c.bf16 %v676, %v676
    %v681 = vpack.c.bf16 %v677, %v677
    %v682 = vld [vmem:[#allocation8] sm:$0xff]
    %v683 = vld [vmem:[#allocation8 + $0x8] sm:$0xff]
    %v684 = vld [vmem:[#allocation8 + $0x10] sm:$0xff]
    %v685 = vld [vmem:[#allocation8 + $0x18] sm:$0xff]
    %v686 = vld [vmem:[#allocation8 + $0x20] sm:$0xff]
    %v687 = vld [vmem:[#allocation8 + $0x28] sm:$0xff]
    %v688 = vld [vmem:[#allocation8 + $0x30] sm:$0xff]
    %v689 = vld [vmem:[#allocation8 + $0x38] sm:$0xff]
    %v690 = vld [vmem:[#allocation8 + $0x40] sm:$0xff]
    %v691 = vld [vmem:[#allocation8 + $0x48] sm:$0xff]
    %v692 = vld [vmem:[#allocation8 + $0x50] sm:$0xff]
    %v693 = vld [vmem:[#allocation8 + $0x58] sm:$0xff]
    %v694 = vld [vmem:[#allocation8 + $0x60] sm:$0xff]
    %v695 = vld [vmem:[#allocation8 + $0x68] sm:$0xff]
    %v696 = vld [vmem:[#allocation8 + $0x70] sm:$0xff]
    %v697 = vld [vmem:[#allocation8 + $0x78] sm:$0xff]
    %v698 = vld [vmem:[#allocation8 + $0x80] sm:$0xff]
    %v699 = vld [vmem:[#allocation8 + $0x88] sm:$0xff]
    %v700 = vld [vmem:[#allocation8 + $0x90] sm:$0xff]
    %v701 = vld [vmem:[#allocation8 + $0x98] sm:$0xff]
    %v702 = vld [vmem:[#allocation8 + $0xa0] sm:$0xff]
    %v703 = vld [vmem:[#allocation8 + $0xa8] sm:$0xff]
    %v704 = vld [vmem:[#allocation8 + $0xb0] sm:$0xff]
    %v705 = vld [vmem:[#allocation8 + $0xb8] sm:$0xff]
    %v706 = vld [vmem:[#allocation8 + $0xc0] sm:$0xff]
    %v707 = vld [vmem:[#allocation8 + $0xc8] sm:$0xff]
    %v708 = vld [vmem:[#allocation8 + $0xd0] sm:$0xff]
    %v709 = vld [vmem:[#allocation8 + $0xd8] sm:$0xff]
    %v710 = vld [vmem:[#allocation8 + $0xe0] sm:$0xff]
    %v711 = vld [vmem:[#allocation8 + $0xe8] sm:$0xff]
    %v712 = vld [vmem:[#allocation8 + $0xf0] sm:$0xff]
    %v713 = vld [vmem:[#allocation8 + $0xf8] sm:$0xff]
    %v714 = vld [vmem:[#allocation8 + $0x100] sm:$0xff]
    %v715 = vld [vmem:[#allocation8 + $0x108] sm:$0xff]
    %v716 = vld [vmem:[#allocation8 + $0x110] sm:$0xff]
    %v717 = vld [vmem:[#allocation8 + $0x118] sm:$0xff]
    %v718 = vld [vmem:[#allocation8 + $0x120] sm:$0xff]
    %v719 = vld [vmem:[#allocation8 + $0x128] sm:$0xff]
    %v720 = vld [vmem:[#allocation8 + $0x130] sm:$0xff]
    %v721 = vld [vmem:[#allocation8 + $0x138] sm:$0xff]
    %v722 = vld [vmem:[#allocation8 + $0x140] sm:$0xff]
    %v723 = vld [vmem:[#allocation8 + $0x148] sm:$0xff]
    %v724 = vld [vmem:[#allocation8 + $0x150] sm:$0xff]
    %v725 = vld [vmem:[#allocation8 + $0x158] sm:$0xff]
    %v726 = vld [vmem:[#allocation8 + $0x160] sm:$0xff]
    %v727 = vld [vmem:[#allocation8 + $0x168] sm:$0xff]
    %v728 = vld [vmem:[#allocation8 + $0x170] sm:$0xff]
    %v729 = vld [vmem:[#allocation8 + $0x178] sm:$0xff]
    %v730 = vld [vmem:[#allocation8 + $0x180] sm:$0xff]
    %v731 = vld [vmem:[#allocation8 + $0x188] sm:$0xff]
    %v732 = vld [vmem:[#allocation8 + $0x190] sm:$0xff]
    %v733 = vld [vmem:[#allocation8 + $0x198] sm:$0xff]
    %v734 = vld [vmem:[#allocation8 + $0x1a0] sm:$0xff]
    %v735 = vld [vmem:[#allocation8 + $0x1a8] sm:$0xff]
    %v736 = vld [vmem:[#allocation8 + $0x1b0] sm:$0xff]
    %v737 = vld [vmem:[#allocation8 + $0x1b8] sm:$0xff]
    %v738 = vld [vmem:[#allocation8 + $0x1c0] sm:$0xff]
    %v739 = vld [vmem:[#allocation8 + $0x1c8] sm:$0xff]
    %v740 = vld [vmem:[#allocation8 + $0x1d0] sm:$0xff]
    %v741 = vld [vmem:[#allocation8 + $0x1d8] sm:$0xff]
    %v742 = vld [vmem:[#allocation8 + $0x1e0] sm:$0xff]
    %v743 = vld [vmem:[#allocation8 + $0x1e8] sm:$0xff]
    %v744 = vld [vmem:[#allocation8 + $0x1f0] sm:$0xff]
    %v745 = vld [vmem:[#allocation8 + $0x1f8] sm:$0xff]
    %v746 = vld [vmem:[#allocation8 + $0x200] sm:$0xff]
    %v747 = vld [vmem:[#allocation8 + $0x208] sm:$0xff]
    %v748 = vld [vmem:[#allocation8 + $0x210] sm:$0xff]
    %v749 = vld [vmem:[#allocation8 + $0x218] sm:$0xff]
    %v750 = vld [vmem:[#allocation8 + $0x220] sm:$0xff]
    %v751 = vld [vmem:[#allocation8 + $0x228] sm:$0xff]
    %v752 = vld [vmem:[#allocation8 + $0x230] sm:$0xff]
    %v753 = vld [vmem:[#allocation8 + $0x238] sm:$0xff]
    %v754 = vld [vmem:[#allocation8 + $0x240] sm:$0xff]
    %v755 = vld [vmem:[#allocation8 + $0x248] sm:$0xff]
    %v756 = vld [vmem:[#allocation8 + $0x250] sm:$0xff]
    %v757 = vld [vmem:[#allocation8 + $0x258] sm:$0xff]
    %v758 = vld [vmem:[#allocation8 + $0x260] sm:$0xff]
    %v759 = vld [vmem:[#allocation8 + $0x268] sm:$0xff]
    %v760 = vld [vmem:[#allocation8 + $0x270] sm:$0xff]
    %v761 = vld [vmem:[#allocation8 + $0x278] sm:$0xff]
    %v762 = vld [vmem:[#allocation8 + $0x280] sm:$0xff]
    %v763 = vld [vmem:[#allocation8 + $0x288] sm:$0xff]
    %v764 = vld [vmem:[#allocation8 + $0x290] sm:$0xff]
    %v765 = vld [vmem:[#allocation8 + $0x298] sm:$0xff]
    %v766 = vld [vmem:[#allocation8 + $0x2a0] sm:$0xff]
    %v767 = vld [vmem:[#allocation8 + $0x2a8] sm:$0xff]
    %v768 = vld [vmem:[#allocation8 + $0x2b0] sm:$0xff]
    %v769 = vld [vmem:[#allocation8 + $0x2b8] sm:$0xff]
    %v770 = vld [vmem:[#allocation8 + $0x2c0] sm:$0xff]
    %v771 = vld [vmem:[#allocation8 + $0x2c8] sm:$0xff]
    %v772 = vld [vmem:[#allocation8 + $0x2d0] sm:$0xff]
    %v773 = vld [vmem:[#allocation8 + $0x2d8] sm:$0xff]
    %v774 = vld [vmem:[#allocation8 + $0x2e0] sm:$0xff]
    %v775 = vld [vmem:[#allocation8 + $0x2e8] sm:$0xff]
    %v776 = vld [vmem:[#allocation8 + $0x2f0] sm:$0xff]
    %v777 = vld [vmem:[#allocation8 + $0x2f8] sm:$0xff]
    %v778 = vld [vmem:[#allocation8 + $0x300] sm:$0xff]
    %v779 = vld [vmem:[#allocation8 + $0x308] sm:$0xff]
    %v780 = vld [vmem:[#allocation8 + $0x310] sm:$0xff]
    %v781 = vld [vmem:[#allocation8 + $0x318] sm:$0xff]
    %v782 = vld [vmem:[#allocation8 + $0x320] sm:$0xff]
    %v783 = vld [vmem:[#allocation8 + $0x328] sm:$0xff]
    %v784 = vld [vmem:[#allocation8 + $0x330] sm:$0xff]
    %v785 = vld [vmem:[#allocation8 + $0x338] sm:$0xff]
    %v786 = vld [vmem:[#allocation8 + $0x340] sm:$0xff]
    %v787 = vld [vmem:[#allocation8 + $0x348] sm:$0xff]
    %v788 = vld [vmem:[#allocation8 + $0x350] sm:$0xff]
    %v789 = vld [vmem:[#allocation8 + $0x358] sm:$0xff]
    %v790 = vld [vmem:[#allocation8 + $0x360] sm:$0xff]
    %v791 = vld [vmem:[#allocation8 + $0x368] sm:$0xff]
    %v792 = vld [vmem:[#allocation8 + $0x370] sm:$0xff]
    %v793 = vld [vmem:[#allocation8 + $0x378] sm:$0xff]
    %v794 = vld [vmem:[#allocation8 + $0x380] sm:$0xff]
    %v795 = vld [vmem:[#allocation8 + $0x388] sm:$0xff]
    %v796 = vld [vmem:[#allocation8 + $0x390] sm:$0xff]
    %v797 = vld [vmem:[#allocation8 + $0x398] sm:$0xff]
    %v798 = vld [vmem:[#allocation8 + $0x3a0] sm:$0xff]
    %v799 = vld [vmem:[#allocation8 + $0x3a8] sm:$0xff]
    %v800 = vld [vmem:[#allocation8 + $0x3b0] sm:$0xff]
    %v801 = vld [vmem:[#allocation8 + $0x3b8] sm:$0xff]
    %v802 = vld [vmem:[#allocation8 + $0x3c0] sm:$0xff]
    %v803 = vld [vmem:[#allocation8 + $0x3c8] sm:$0xff]
    %v804 = vld [vmem:[#allocation8 + $0x3d0] sm:$0xff]
    %v805 = vld [vmem:[#allocation8 + $0x3d8] sm:$0xff]
    %v806 = vld [vmem:[#allocation8 + $0x3e0] sm:$0xff]
    %v807 = vld [vmem:[#allocation8 + $0x3e8] sm:$0xff]
    %v808 = vld [vmem:[#allocation8 + $0x3f0] sm:$0xff]
    %v809 = vld [vmem:[#allocation8 + $0x3f8] sm:$0xff]
    %v810 = vld [vmem:[#allocation8 + $0x400] sm:$0xff]
    %v811 = vld [vmem:[#allocation8 + $0x408] sm:$0xff]
    %v812 = vld [vmem:[#allocation8 + $0x410] sm:$0xff]
    %v813 = vld [vmem:[#allocation8 + $0x418] sm:$0xff]
    %v814 = vld [vmem:[#allocation8 + $0x420] sm:$0xff]
    %v815 = vld [vmem:[#allocation8 + $0x428] sm:$0xff]
    %v816 = vld [vmem:[#allocation8 + $0x430] sm:$0xff]
    %v817 = vld [vmem:[#allocation8 + $0x438] sm:$0xff]
    %v818 = vld [vmem:[#allocation8 + $0x440] sm:$0xff]
    %v819 = vld [vmem:[#allocation8 + $0x448] sm:$0xff]
    %v820 = vld [vmem:[#allocation8 + $0x450] sm:$0xff]
    %v821 = vld [vmem:[#allocation8 + $0x458] sm:$0xff]
    %v822 = vld [vmem:[#allocation8 + $0x460] sm:$0xff]
    %v823 = vld [vmem:[#allocation8 + $0x468] sm:$0xff]
    %v824 = vld [vmem:[#allocation8 + $0x470] sm:$0xff]
    %v825 = vld [vmem:[#allocation8 + $0x478] sm:$0xff]
    %v826 = vld [vmem:[#allocation8 + $0x480] sm:$0xff]
    %v827 = vld [vmem:[#allocation8 + $0x488] sm:$0xff]
    %v828 = vld [vmem:[#allocation8 + $0x490] sm:$0xff]
    %v829 = vld [vmem:[#allocation8 + $0x498] sm:$0xff]
    %v830 = vld [vmem:[#allocation8 + $0x4a0] sm:$0xff]
    %v831 = vld [vmem:[#allocation8 + $0x4a8] sm:$0xff]
    %v832 = vld [vmem:[#allocation8 + $0x4b0] sm:$0xff]
    %v833 = vld [vmem:[#allocation8 + $0x4b8] sm:$0xff]
    %v834 = vld [vmem:[#allocation8 + $0x4c0] sm:$0xff]
    %v835 = vld [vmem:[#allocation8 + $0x4c8] sm:$0xff]
    %v836 = vld [vmem:[#allocation8 + $0x4d0] sm:$0xff]
    %v837 = vld [vmem:[#allocation8 + $0x4d8] sm:$0xff]
    %v838 = vld [vmem:[#allocation8 + $0x4e0] sm:$0xff]
    %v839 = vld [vmem:[#allocation8 + $0x4e8] sm:$0xff]
    %v840 = vld [vmem:[#allocation8 + $0x4f0] sm:$0xff]
    %v841 = vld [vmem:[#allocation8 + $0x4f8] sm:$0xff]
    %v842 = vld [vmem:[#allocation8 + $0x500] sm:$0xff]
    %v843 = vld [vmem:[#allocation8 + $0x508] sm:$0xff]
    %v844 = vld [vmem:[#allocation8 + $0x510] sm:$0xff]
    %v845 = vld [vmem:[#allocation8 + $0x518] sm:$0xff]
    %v846 = vld [vmem:[#allocation8 + $0x520] sm:$0xff]
    %v847 = vld [vmem:[#allocation8 + $0x528] sm:$0xff]
    %v848 = vld [vmem:[#allocation8 + $0x530] sm:$0xff]
    %v849 = vld [vmem:[#allocation8 + $0x538] sm:$0xff]
    %v850 = vld [vmem:[#allocation8 + $0x540] sm:$0xff]
    %v851 = vld [vmem:[#allocation8 + $0x548] sm:$0xff]
    %v852 = vld [vmem:[#allocation8 + $0x550] sm:$0xff]
    %v853 = vld [vmem:[#allocation8 + $0x558] sm:$0xff]
    %v854 = vld [vmem:[#allocation8 + $0x560] sm:$0xff]
    %v855 = vld [vmem:[#allocation8 + $0x568] sm:$0xff]
    %v856 = vld [vmem:[#allocation8 + $0x570] sm:$0xff]
    %v857 = vld [vmem:[#allocation8 + $0x578] sm:$0xff]
    %v858 = vld [vmem:[#allocation8 + $0x580] sm:$0xff]
    %v859 = vld [vmem:[#allocation8 + $0x588] sm:$0xff]
    %v860 = vld [vmem:[#allocation8 + $0x590] sm:$0xff]
    %v861 = vld [vmem:[#allocation8 + $0x598] sm:$0xff]
    %v862 = vld [vmem:[#allocation8 + $0x5a0] sm:$0xff]
    %v863 = vld [vmem:[#allocation8 + $0x5a8] sm:$0xff]
    %v864 = vld [vmem:[#allocation8 + $0x5b0] sm:$0xff]
    %v865 = vld [vmem:[#allocation8 + $0x5b8] sm:$0xff]
    %v866 = vld [vmem:[#allocation8 + $0x5c0] sm:$0xff]
    %v867 = vld [vmem:[#allocation8 + $0x5c8] sm:$0xff]
    %v868 = vld [vmem:[#allocation8 + $0x5d0] sm:$0xff]
    %v869 = vld [vmem:[#allocation8 + $0x5d8] sm:$0xff]
    %v870 = vld [vmem:[#allocation8 + $0x5e0] sm:$0xff]
    %v871 = vld [vmem:[#allocation8 + $0x5e8] sm:$0xff]
    %v872 = vld [vmem:[#allocation8 + $0x5f0] sm:$0xff]
    %v873 = vld [vmem:[#allocation8 + $0x5f8] sm:$0xff]
    %v874 = vld [vmem:[#allocation8 + $0x600] sm:$0xff]
    %v875 = vld [vmem:[#allocation8 + $0x608] sm:$0xff]
    %v876 = vld [vmem:[#allocation8 + $0x610] sm:$0xff]
    %v877 = vld [vmem:[#allocation8 + $0x618] sm:$0xff]
    %v878 = vld [vmem:[#allocation8 + $0x620] sm:$0xff]
    %v879 = vld [vmem:[#allocation8 + $0x628] sm:$0xff]
    %v880 = vld [vmem:[#allocation8 + $0x630] sm:$0xff]
    %v881 = vld [vmem:[#allocation8 + $0x638] sm:$0xff]
    %v882 = vld [vmem:[#allocation8 + $0x640] sm:$0xff]
    %v883 = vld [vmem:[#allocation8 + $0x648] sm:$0xff]
    %v884 = vld [vmem:[#allocation8 + $0x650] sm:$0xff]
    %v885 = vld [vmem:[#allocation8 + $0x658] sm:$0xff]
    %v886 = vld [vmem:[#allocation8 + $0x660] sm:$0xff]
    %v887 = vld [vmem:[#allocation8 + $0x668] sm:$0xff]
    %v888 = vld [vmem:[#allocation8 + $0x670] sm:$0xff]
    %v889 = vld [vmem:[#allocation8 + $0x678] sm:$0xff]
    %v890 = vld [vmem:[#allocation8 + $0x680] sm:$0xff]
    %v891 = vld [vmem:[#allocation8 + $0x688] sm:$0xff]
    %v892 = vld [vmem:[#allocation8 + $0x690] sm:$0xff]
    %v893 = vld [vmem:[#allocation8 + $0x698] sm:$0xff]
    %v894 = vld [vmem:[#allocation8 + $0x6a0] sm:$0xff]
    %v895 = vld [vmem:[#allocation8 + $0x6a8] sm:$0xff]
    %v896 = vld [vmem:[#allocation8 + $0x6b0] sm:$0xff]
    %v897 = vld [vmem:[#allocation8 + $0x6b8] sm:$0xff]
    %v898 = vld [vmem:[#allocation8 + $0x6c0] sm:$0xff]
    %v899 = vld [vmem:[#allocation8 + $0x6c8] sm:$0xff]
    %v900 = vld [vmem:[#allocation8 + $0x6d0] sm:$0xff]
    %v901 = vld [vmem:[#allocation8 + $0x6d8] sm:$0xff]
    %v902 = vld [vmem:[#allocation8 + $0x6e0] sm:$0xff]
    %v903 = vld [vmem:[#allocation8 + $0x6e8] sm:$0xff]
    %v904 = vld [vmem:[#allocation8 + $0x6f0] sm:$0xff]
    %v905 = vld [vmem:[#allocation8 + $0x6f8] sm:$0xff]
    %v906 = vld [vmem:[#allocation8 + $0x700] sm:$0xff]
    %v907 = vld [vmem:[#allocation8 + $0x708] sm:$0xff]
    %v908 = vld [vmem:[#allocation8 + $0x710] sm:$0xff]
    %v909 = vld [vmem:[#allocation8 + $0x718] sm:$0xff]
    %v910 = vld [vmem:[#allocation8 + $0x720] sm:$0xff]
    %v911 = vld [vmem:[#allocation8 + $0x728] sm:$0xff]
    %v912 = vld [vmem:[#allocation8 + $0x730] sm:$0xff]
    %v913 = vld [vmem:[#allocation8 + $0x738] sm:$0xff]
    %v914 = vld [vmem:[#allocation8 + $0x740] sm:$0xff]
    %v915 = vld [vmem:[#allocation8 + $0x748] sm:$0xff]
    %v916 = vld [vmem:[#allocation8 + $0x750] sm:$0xff]
    %v917 = vld [vmem:[#allocation8 + $0x758] sm:$0xff]
    %v918 = vld [vmem:[#allocation8 + $0x760] sm:$0xff]
    %v919 = vld [vmem:[#allocation8 + $0x768] sm:$0xff]
    %v920 = vld [vmem:[#allocation8 + $0x770] sm:$0xff]
    %v921 = vld [vmem:[#allocation8 + $0x778] sm:$0xff]
    %v922 = vld [vmem:[#allocation8 + $0x780] sm:$0xff]
    %v923 = vld [vmem:[#allocation8 + $0x788] sm:$0xff]
    %v924 = vld [vmem:[#allocation8 + $0x790] sm:$0xff]
    %v925 = vld [vmem:[#allocation8 + $0x798] sm:$0xff]
    %v926 = vld [vmem:[#allocation8 + $0x7a0] sm:$0xff]
    %v927 = vld [vmem:[#allocation8 + $0x7a8] sm:$0xff]
    %v928 = vld [vmem:[#allocation8 + $0x7b0] sm:$0xff]
    %v929 = vld [vmem:[#allocation8 + $0x7b8] sm:$0xff]
    %v930 = vld [vmem:[#allocation8 + $0x7c0] sm:$0xff]
    %v931 = vld [vmem:[#allocation8 + $0x7c8] sm:$0xff]
    %v932 = vld [vmem:[#allocation8 + $0x7d0] sm:$0xff]
    %v933 = vld [vmem:[#allocation8 + $0x7d8] sm:$0xff]
    %v934 = vld [vmem:[#allocation8 + $0x7e0] sm:$0xff]
    %v935 = vld [vmem:[#allocation8 + $0x7e8] sm:$0xff]
    %v936 = vld [vmem:[#allocation8 + $0x7f0] sm:$0xff]
    %v937 = vld [vmem:[#allocation8 + $0x7f8] sm:$0xff]
    %v938 = vld [vmem:[%s6] sm:$0xff]
    %v940 = vlaneseq
    %v941 = vshrl.u32 %v940, 7
    %v942 = vsub.s32 0, %v941
    %v943 = vrot.slane %v938, %v942
    %v944 = vlaneseq
    %v945 = vshrl.u32 %v944, 7
    %v946 = vsub.s32 1, %v945
    %v947 = vrot.slane %v938, %v946
    %v948 = vlaneseq
    %v949 = vshrl.u32 %v948, 7
    %v950 = vsub.s32 2, %v949
    %v951 = vrot.slane %v938, %v950
    %v952 = vlaneseq
    %v953 = vshrl.u32 %v952, 7
    %v954 = vsub.s32 3, %v953
    %v955 = vrot.slane %v938, %v954
    %v956 = vlaneseq
    %v957 = vshrl.u32 %v956, 7
    %v958 = vsub.s32 4, %v957
    %v959 = vrot.slane %v938, %v958
    %v960 = vlaneseq
    %v961 = vshrl.u32 %v960, 7
    %v962 = vsub.s32 5, %v961
    %v963 = vrot.slane %v938, %v962
    %v964 = vlaneseq
    %v965 = vshrl.u32 %v964, 7
    %v966 = vsub.s32 6, %v965
    %v967 = vrot.slane %v938, %v966
    %v968 = vlaneseq
    %v969 = vshrl.u32 %v968, 7
    %v970 = vsub.s32 7, %v969
    %v971 = vrot.slane %v938, %v970
    %v1236 = vunpack.c.l.b16 %v682
    %v1237 = vunpack.c.h.b16 %v682
    %v1238 = vunpack.c.l.b16 %v683
    %v1239 = vunpack.c.h.b16 %v683
    %v1240 = vunpack.c.l.b16 %v684
    %v1241 = vunpack.c.h.b16 %v684
    %v1242 = vunpack.c.l.b16 %v685
    %v1243 = vunpack.c.h.b16 %v685
    %v1244 = vunpack.c.l.b16 %v686
    %v1245 = vunpack.c.h.b16 %v686
    %v1246 = vunpack.c.l.b16 %v687
    %v1247 = vunpack.c.h.b16 %v687
    %v1248 = vunpack.c.l.b16 %v688
    %v1249 = vunpack.c.h.b16 %v688
    %v1250 = vunpack.c.l.b16 %v689
    %v1251 = vunpack.c.h.b16 %v689
    %v1252 = vunpack.c.l.b16 %v690
    %v1253 = vunpack.c.h.b16 %v690
    %v1254 = vunpack.c.l.b16 %v691
    %v1255 = vunpack.c.h.b16 %v691
    %v1256 = vunpack.c.l.b16 %v692
    %v1257 = vunpack.c.h.b16 %v692
    %v1258 = vunpack.c.l.b16 %v693
    %v1259 = vunpack.c.h.b16 %v693
    %v1260 = vunpack.c.l.b16 %v694
    %v1261 = vunpack.c.h.b16 %v694
    %v1262 = vunpack.c.l.b16 %v695
    %v1263 = vunpack.c.h.b16 %v695
    %v1264 = vunpack.c.l.b16 %v696
    %v1265 = vunpack.c.h.b16 %v696
    %v1266 = vunpack.c.l.b16 %v697
    %v1267 = vunpack.c.h.b16 %v697
    %v1268 = vunpack.c.l.b16 %v698
    %v1269 = vunpack.c.h.b16 %v698
    %v1270 = vunpack.c.l.b16 %v699
    %v1271 = vunpack.c.h.b16 %v699
    %v1272 = vunpack.c.l.b16 %v700
    %v1273 = vunpack.c.h.b16 %v700
    %v1274 = vunpack.c.l.b16 %v701
    %v1275 = vunpack.c.h.b16 %v701
    %v1276 = vunpack.c.l.b16 %v702
    %v1277 = vunpack.c.h.b16 %v702
    %v1278 = vunpack.c.l.b16 %v703
    %v1279 = vunpack.c.h.b16 %v703
    %v1280 = vunpack.c.l.b16 %v704
    %v1281 = vunpack.c.h.b16 %v704
    %v1282 = vunpack.c.l.b16 %v705
    %v1283 = vunpack.c.h.b16 %v705
    %v1284 = vunpack.c.l.b16 %v706
    %v1285 = vunpack.c.h.b16 %v706
    %v1286 = vunpack.c.l.b16 %v707
    %v1287 = vunpack.c.h.b16 %v707
    %v1288 = vunpack.c.l.b16 %v708
    %v1289 = vunpack.c.h.b16 %v708
    %v1290 = vunpack.c.l.b16 %v709
    %v1291 = vunpack.c.h.b16 %v709
    %v1292 = vunpack.c.l.b16 %v710
    %v1293 = vunpack.c.h.b16 %v710
    %v1294 = vunpack.c.l.b16 %v711
    %v1295 = vunpack.c.h.b16 %v711
    %v1296 = vunpack.c.l.b16 %v712
    %v1297 = vunpack.c.h.b16 %v712
    %v1298 = vunpack.c.l.b16 %v713
    %v1299 = vunpack.c.h.b16 %v713
    %v1300 = vunpack.c.l.b16 %v714
    %v1301 = vunpack.c.h.b16 %v714
    %v1302 = vunpack.c.l.b16 %v715
    %v1303 = vunpack.c.h.b16 %v715
    %v1304 = vunpack.c.l.b16 %v716
    %v1305 = vunpack.c.h.b16 %v716
    %v1306 = vunpack.c.l.b16 %v717
    %v1307 = vunpack.c.h.b16 %v717
    %v1308 = vunpack.c.l.b16 %v718
    %v1309 = vunpack.c.h.b16 %v718
    %v1310 = vunpack.c.l.b16 %v719
    %v1311 = vunpack.c.h.b16 %v719
    %v1312 = vunpack.c.l.b16 %v720
    %v1313 = vunpack.c.h.b16 %v720
    %v1314 = vunpack.c.l.b16 %v721
    %v1315 = vunpack.c.h.b16 %v721
    %v1316 = vunpack.c.l.b16 %v722
    %v1317 = vunpack.c.h.b16 %v722
    %v1318 = vunpack.c.l.b16 %v723
    %v1319 = vunpack.c.h.b16 %v723
    %v1320 = vunpack.c.l.b16 %v724
    %v1321 = vunpack.c.h.b16 %v724
    %v1322 = vunpack.c.l.b16 %v725
    %v1323 = vunpack.c.h.b16 %v725
    %v1324 = vunpack.c.l.b16 %v726
    %v1325 = vunpack.c.h.b16 %v726
    %v1326 = vunpack.c.l.b16 %v727
    %v1327 = vunpack.c.h.b16 %v727
    %v1328 = vunpack.c.l.b16 %v728
    %v1329 = vunpack.c.h.b16 %v728
    %v1330 = vunpack.c.l.b16 %v729
    %v1331 = vunpack.c.h.b16 %v729
    %v1332 = vunpack.c.l.b16 %v730
    %v1333 = vunpack.c.h.b16 %v730
    %v1334 = vunpack.c.l.b16 %v731
    %v1335 = vunpack.c.h.b16 %v731
    %v1336 = vunpack.c.l.b16 %v732
    %v1337 = vunpack.c.h.b16 %v732
    %v1338 = vunpack.c.l.b16 %v733
    %v1339 = vunpack.c.h.b16 %v733
    %v1340 = vunpack.c.l.b16 %v734
    %v1341 = vunpack.c.h.b16 %v734
    %v1342 = vunpack.c.l.b16 %v735
    %v1343 = vunpack.c.h.b16 %v735
    %v1344 = vunpack.c.l.b16 %v736
    %v1345 = vunpack.c.h.b16 %v736
    %v1346 = vunpack.c.l.b16 %v737
    %v1347 = vunpack.c.h.b16 %v737
    %v1348 = vunpack.c.l.b16 %v738
    %v1349 = vunpack.c.h.b16 %v738
    %v1350 = vunpack.c.l.b16 %v739
    %v1351 = vunpack.c.h.b16 %v739
    %v1352 = vunpack.c.l.b16 %v740
    %v1353 = vunpack.c.h.b16 %v740
    %v1354 = vunpack.c.l.b16 %v741
    %v1355 = vunpack.c.h.b16 %v741
    %v1356 = vunpack.c.l.b16 %v742
    %v1357 = vunpack.c.h.b16 %v742
    %v1358 = vunpack.c.l.b16 %v743
    %v1359 = vunpack.c.h.b16 %v743
    %v1360 = vunpack.c.l.b16 %v744
    %v1361 = vunpack.c.h.b16 %v744
    %v1362 = vunpack.c.l.b16 %v745
    %v1363 = vunpack.c.h.b16 %v745
    %v1364 = vunpack.c.l.b16 %v746
    %v1365 = vunpack.c.h.b16 %v746
    %v1366 = vunpack.c.l.b16 %v747
    %v1367 = vunpack.c.h.b16 %v747
    %v1368 = vunpack.c.l.b16 %v748
    %v1369 = vunpack.c.h.b16 %v748
    %v1370 = vunpack.c.l.b16 %v749
    %v1371 = vunpack.c.h.b16 %v749
    %v1372 = vunpack.c.l.b16 %v750
    %v1373 = vunpack.c.h.b16 %v750
    %v1374 = vunpack.c.l.b16 %v751
    %v1375 = vunpack.c.h.b16 %v751
    %v1376 = vunpack.c.l.b16 %v752
    %v1377 = vunpack.c.h.b16 %v752
    %v1378 = vunpack.c.l.b16 %v753
    %v1379 = vunpack.c.h.b16 %v753
    %v1380 = vunpack.c.l.b16 %v754
    %v1381 = vunpack.c.h.b16 %v754
    %v1382 = vunpack.c.l.b16 %v755
    %v1383 = vunpack.c.h.b16 %v755
    %v1384 = vunpack.c.l.b16 %v756
    %v1385 = vunpack.c.h.b16 %v756
    %v1386 = vunpack.c.l.b16 %v757
    %v1387 = vunpack.c.h.b16 %v757
    %v1388 = vunpack.c.l.b16 %v758
    %v1389 = vunpack.c.h.b16 %v758
    %v1390 = vunpack.c.l.b16 %v759
    %v1391 = vunpack.c.h.b16 %v759
    %v1392 = vunpack.c.l.b16 %v760
    %v1393 = vunpack.c.h.b16 %v760
    %v1394 = vunpack.c.l.b16 %v761
    %v1395 = vunpack.c.h.b16 %v761
    %v1396 = vunpack.c.l.b16 %v762
    %v1397 = vunpack.c.h.b16 %v762
    %v1398 = vunpack.c.l.b16 %v763
    %v1399 = vunpack.c.h.b16 %v763
    %v1400 = vunpack.c.l.b16 %v764
    %v1401 = vunpack.c.h.b16 %v764
    %v1402 = vunpack.c.l.b16 %v765
    %v1403 = vunpack.c.h.b16 %v765
    %v1404 = vunpack.c.l.b16 %v766
    %v1405 = vunpack.c.h.b16 %v766
    %v1406 = vunpack.c.l.b16 %v767
    %v1407 = vunpack.c.h.b16 %v767
    %v1408 = vunpack.c.l.b16 %v768
    %v1409 = vunpack.c.h.b16 %v768
    %v1410 = vunpack.c.l.b16 %v769
    %v1411 = vunpack.c.h.b16 %v769
    %v1412 = vunpack.c.l.b16 %v770
    %v1413 = vunpack.c.h.b16 %v770
    %v1414 = vunpack.c.l.b16 %v771
    %v1415 = vunpack.c.h.b16 %v771
    %v1416 = vunpack.c.l.b16 %v772
    %v1417 = vunpack.c.h.b16 %v772
    %v1418 = vunpack.c.l.b16 %v773
    %v1419 = vunpack.c.h.b16 %v773
    %v1420 = vunpack.c.l.b16 %v774
    %v1421 = vunpack.c.h.b16 %v774
    %v1422 = vunpack.c.l.b16 %v775
    %v1423 = vunpack.c.h.b16 %v775
    %v1424 = vunpack.c.l.b16 %v776
    %v1425 = vunpack.c.h.b16 %v776
    %v1426 = vunpack.c.l.b16 %v777
    %v1427 = vunpack.c.h.b16 %v777
    %v1428 = vunpack.c.l.b16 %v778
    %v1429 = vunpack.c.h.b16 %v778
    %v1430 = vunpack.c.l.b16 %v779
    %v1431 = vunpack.c.h.b16 %v779
    %v1432 = vunpack.c.l.b16 %v780
    %v1433 = vunpack.c.h.b16 %v780
    %v1434 = vunpack.c.l.b16 %v781
    %v1435 = vunpack.c.h.b16 %v781
    %v1436 = vunpack.c.l.b16 %v782
    %v1437 = vunpack.c.h.b16 %v782
    %v1438 = vunpack.c.l.b16 %v783
    %v1439 = vunpack.c.h.b16 %v783
    %v1440 = vunpack.c.l.b16 %v784
    %v1441 = vunpack.c.h.b16 %v784
    %v1442 = vunpack.c.l.b16 %v785
    %v1443 = vunpack.c.h.b16 %v785
    %v1444 = vunpack.c.l.b16 %v786
    %v1445 = vunpack.c.h.b16 %v786
    %v1446 = vunpack.c.l.b16 %v787
    %v1447 = vunpack.c.h.b16 %v787
    %v1448 = vunpack.c.l.b16 %v788
    %v1449 = vunpack.c.h.b16 %v788
    %v1450 = vunpack.c.l.b16 %v789
    %v1451 = vunpack.c.h.b16 %v789
    %v1452 = vunpack.c.l.b16 %v790
    %v1453 = vunpack.c.h.b16 %v790
    %v1454 = vunpack.c.l.b16 %v791
    %v1455 = vunpack.c.h.b16 %v791
    %v1456 = vunpack.c.l.b16 %v792
    %v1457 = vunpack.c.h.b16 %v792
    %v1458 = vunpack.c.l.b16 %v793
    %v1459 = vunpack.c.h.b16 %v793
    %v1460 = vunpack.c.l.b16 %v794
    %v1461 = vunpack.c.h.b16 %v794
    %v1462 = vunpack.c.l.b16 %v795
    %v1463 = vunpack.c.h.b16 %v795
    %v1464 = vunpack.c.l.b16 %v796
    %v1465 = vunpack.c.h.b16 %v796
    %v1466 = vunpack.c.l.b16 %v797
    %v1467 = vunpack.c.h.b16 %v797
    %v1468 = vunpack.c.l.b16 %v798
    %v1469 = vunpack.c.h.b16 %v798
    %v1470 = vunpack.c.l.b16 %v799
    %v1471 = vunpack.c.h.b16 %v799
    %v1472 = vunpack.c.l.b16 %v800
    %v1473 = vunpack.c.h.b16 %v800
    %v1474 = vunpack.c.l.b16 %v801
    %v1475 = vunpack.c.h.b16 %v801
    %v1476 = vunpack.c.l.b16 %v802
    %v1477 = vunpack.c.h.b16 %v802
    %v1478 = vunpack.c.l.b16 %v803
    %v1479 = vunpack.c.h.b16 %v803
    %v1480 = vunpack.c.l.b16 %v804
    %v1481 = vunpack.c.h.b16 %v804
    %v1482 = vunpack.c.l.b16 %v805
    %v1483 = vunpack.c.h.b16 %v805
    %v1484 = vunpack.c.l.b16 %v806
    %v1485 = vunpack.c.h.b16 %v806
    %v1486 = vunpack.c.l.b16 %v807
    %v1487 = vunpack.c.h.b16 %v807
    %v1488 = vunpack.c.l.b16 %v808
    %v1489 = vunpack.c.h.b16 %v808
    %v1490 = vunpack.c.l.b16 %v809
    %v1491 = vunpack.c.h.b16 %v809
    %v1492 = vunpack.c.l.b16 %v810
    %v1493 = vunpack.c.h.b16 %v810
    %v1494 = vunpack.c.l.b16 %v811
    %v1495 = vunpack.c.h.b16 %v811
    %v1496 = vunpack.c.l.b16 %v812
    %v1497 = vunpack.c.h.b16 %v812
    %v1498 = vunpack.c.l.b16 %v813
    %v1499 = vunpack.c.h.b16 %v813
    %v1500 = vunpack.c.l.b16 %v814
    %v1501 = vunpack.c.h.b16 %v814
    %v1502 = vunpack.c.l.b16 %v815
    %v1503 = vunpack.c.h.b16 %v815
    %v1504 = vunpack.c.l.b16 %v816
    %v1505 = vunpack.c.h.b16 %v816
    %v1506 = vunpack.c.l.b16 %v817
    %v1507 = vunpack.c.h.b16 %v817
    %v1508 = vunpack.c.l.b16 %v818
    %v1509 = vunpack.c.h.b16 %v818
    %v1510 = vunpack.c.l.b16 %v819
    %v1511 = vunpack.c.h.b16 %v819
    %v1512 = vunpack.c.l.b16 %v820
    %v1513 = vunpack.c.h.b16 %v820
    %v1514 = vunpack.c.l.b16 %v821
    %v1515 = vunpack.c.h.b16 %v821
    %v1516 = vunpack.c.l.b16 %v822
    %v1517 = vunpack.c.h.b16 %v822
    %v1518 = vunpack.c.l.b16 %v823
    %v1519 = vunpack.c.h.b16 %v823
    %v1520 = vunpack.c.l.b16 %v824
    %v1521 = vunpack.c.h.b16 %v824
    %v1522 = vunpack.c.l.b16 %v825
    %v1523 = vunpack.c.h.b16 %v825
    %v1524 = vunpack.c.l.b16 %v826
    %v1525 = vunpack.c.h.b16 %v826
    %v1526 = vunpack.c.l.b16 %v827
    %v1527 = vunpack.c.h.b16 %v827
    %v1528 = vunpack.c.l.b16 %v828
    %v1529 = vunpack.c.h.b16 %v828
    %v1530 = vunpack.c.l.b16 %v829
    %v1531 = vunpack.c.h.b16 %v829
    %v1532 = vunpack.c.l.b16 %v830
    %v1533 = vunpack.c.h.b16 %v830
    %v1534 = vunpack.c.l.b16 %v831
    %v1535 = vunpack.c.h.b16 %v831
    %v1536 = vunpack.c.l.b16 %v832
    %v1537 = vunpack.c.h.b16 %v832
    %v1538 = vunpack.c.l.b16 %v833
    %v1539 = vunpack.c.h.b16 %v833
    %v1540 = vunpack.c.l.b16 %v834
    %v1541 = vunpack.c.h.b16 %v834
    %v1542 = vunpack.c.l.b16 %v835
    %v1543 = vunpack.c.h.b16 %v835
    %v1544 = vunpack.c.l.b16 %v836
    %v1545 = vunpack.c.h.b16 %v836
    %v1546 = vunpack.c.l.b16 %v837
    %v1547 = vunpack.c.h.b16 %v837
    %v1548 = vunpack.c.l.b16 %v838
    %v1549 = vunpack.c.h.b16 %v838
    %v1550 = vunpack.c.l.b16 %v839
    %v1551 = vunpack.c.h.b16 %v839
    %v1552 = vunpack.c.l.b16 %v840
    %v1553 = vunpack.c.h.b16 %v840
    %v1554 = vunpack.c.l.b16 %v841
    %v1555 = vunpack.c.h.b16 %v841
    %v1556 = vunpack.c.l.b16 %v842
    %v1557 = vunpack.c.h.b16 %v842
    %v1558 = vunpack.c.l.b16 %v843
    %v1559 = vunpack.c.h.b16 %v843
    %v1560 = vunpack.c.l.b16 %v844
    %v1561 = vunpack.c.h.b16 %v844
    %v1562 = vunpack.c.l.b16 %v845
    %v1563 = vunpack.c.h.b16 %v845
    %v1564 = vunpack.c.l.b16 %v846
    %v1565 = vunpack.c.h.b16 %v846
    %v1566 = vunpack.c.l.b16 %v847
    %v1567 = vunpack.c.h.b16 %v847
    %v1568 = vunpack.c.l.b16 %v848
    %v1569 = vunpack.c.h.b16 %v848
    %v1570 = vunpack.c.l.b16 %v849
    %v1571 = vunpack.c.h.b16 %v849
    %v1572 = vunpack.c.l.b16 %v850
    %v1573 = vunpack.c.h.b16 %v850
    %v1574 = vunpack.c.l.b16 %v851
    %v1575 = vunpack.c.h.b16 %v851
    %v1576 = vunpack.c.l.b16 %v852
    %v1577 = vunpack.c.h.b16 %v852
    %v1578 = vunpack.c.l.b16 %v853
    %v1579 = vunpack.c.h.b16 %v853
    %v1580 = vunpack.c.l.b16 %v854
    %v1581 = vunpack.c.h.b16 %v854
    %v1582 = vunpack.c.l.b16 %v855
    %v1583 = vunpack.c.h.b16 %v855
    %v1584 = vunpack.c.l.b16 %v856
    %v1585 = vunpack.c.h.b16 %v856
    %v1586 = vunpack.c.l.b16 %v857
    %v1587 = vunpack.c.h.b16 %v857
    %v1588 = vunpack.c.l.b16 %v858
    %v1589 = vunpack.c.h.b16 %v858
    %v1590 = vunpack.c.l.b16 %v859
    %v1591 = vunpack.c.h.b16 %v859
    %v1592 = vunpack.c.l.b16 %v860
    %v1593 = vunpack.c.h.b16 %v860
    %v1594 = vunpack.c.l.b16 %v861
    %v1595 = vunpack.c.h.b16 %v861
    %v1596 = vunpack.c.l.b16 %v862
    %v1597 = vunpack.c.h.b16 %v862
    %v1598 = vunpack.c.l.b16 %v863
    %v1599 = vunpack.c.h.b16 %v863
    %v1600 = vunpack.c.l.b16 %v864
    %v1601 = vunpack.c.h.b16 %v864
    %v1602 = vunpack.c.l.b16 %v865
    %v1603 = vunpack.c.h.b16 %v865
    %v1604 = vunpack.c.l.b16 %v866
    %v1605 = vunpack.c.h.b16 %v866
    %v1606 = vunpack.c.l.b16 %v867
    %v1607 = vunpack.c.h.b16 %v867
    %v1608 = vunpack.c.l.b16 %v868
    %v1609 = vunpack.c.h.b16 %v868
    %v1610 = vunpack.c.l.b16 %v869
    %v1611 = vunpack.c.h.b16 %v869
    %v1612 = vunpack.c.l.b16 %v870
    %v1613 = vunpack.c.h.b16 %v870
    %v1614 = vunpack.c.l.b16 %v871
    %v1615 = vunpack.c.h.b16 %v871
    %v1616 = vunpack.c.l.b16 %v872
    %v1617 = vunpack.c.h.b16 %v872
    %v1618 = vunpack.c.l.b16 %v873
    %v1619 = vunpack.c.h.b16 %v873
    %v1620 = vunpack.c.l.b16 %v874
    %v1621 = vunpack.c.h.b16 %v874
    %v1622 = vunpack.c.l.b16 %v875
    %v1623 = vunpack.c.h.b16 %v875
    %v1624 = vunpack.c.l.b16 %v876
    %v1625 = vunpack.c.h.b16 %v876
    %v1626 = vunpack.c.l.b16 %v877
    %v1627 = vunpack.c.h.b16 %v877
    %v1628 = vunpack.c.l.b16 %v878
    %v1629 = vunpack.c.h.b16 %v878
    %v1630 = vunpack.c.l.b16 %v879
    %v1631 = vunpack.c.h.b16 %v879
    %v1632 = vunpack.c.l.b16 %v880
    %v1633 = vunpack.c.h.b16 %v880
    %v1634 = vunpack.c.l.b16 %v881
    %v1635 = vunpack.c.h.b16 %v881
    %v1636 = vunpack.c.l.b16 %v882
    %v1637 = vunpack.c.h.b16 %v882
    %v1638 = vunpack.c.l.b16 %v883
    %v1639 = vunpack.c.h.b16 %v883
    %v1640 = vunpack.c.l.b16 %v884
    %v1641 = vunpack.c.h.b16 %v884
    %v1642 = vunpack.c.l.b16 %v885
    %v1643 = vunpack.c.h.b16 %v885
    %v1644 = vunpack.c.l.b16 %v886
    %v1645 = vunpack.c.h.b16 %v886
    %v1646 = vunpack.c.l.b16 %v887
    %v1647 = vunpack.c.h.b16 %v887
    %v1648 = vunpack.c.l.b16 %v888
    %v1649 = vunpack.c.h.b16 %v888
    %v1650 = vunpack.c.l.b16 %v889
    %v1651 = vunpack.c.h.b16 %v889
    %v1652 = vunpack.c.l.b16 %v890
    %v1653 = vunpack.c.h.b16 %v890
    %v1654 = vunpack.c.l.b16 %v891
    %v1655 = vunpack.c.h.b16 %v891
    %v1656 = vunpack.c.l.b16 %v892
    %v1657 = vunpack.c.h.b16 %v892
    %v1658 = vunpack.c.l.b16 %v893
    %v1659 = vunpack.c.h.b16 %v893
    %v1660 = vunpack.c.l.b16 %v894
    %v1661 = vunpack.c.h.b16 %v894
    %v1662 = vunpack.c.l.b16 %v895
    %v1663 = vunpack.c.h.b16 %v895
    %v1664 = vunpack.c.l.b16 %v896
    %v1665 = vunpack.c.h.b16 %v896
    %v1666 = vunpack.c.l.b16 %v897
    %v1667 = vunpack.c.h.b16 %v897
    %v1668 = vunpack.c.l.b16 %v898
    %v1669 = vunpack.c.h.b16 %v898
    %v1670 = vunpack.c.l.b16 %v899
    %v1671 = vunpack.c.h.b16 %v899
    %v1672 = vunpack.c.l.b16 %v900
    %v1673 = vunpack.c.h.b16 %v900
    %v1674 = vunpack.c.l.b16 %v901
    %v1675 = vunpack.c.h.b16 %v901
    %v1676 = vunpack.c.l.b16 %v902
    %v1677 = vunpack.c.h.b16 %v902
    %v1678 = vunpack.c.l.b16 %v903
    %v1679 = vunpack.c.h.b16 %v903
    %v1680 = vunpack.c.l.b16 %v904
    %v1681 = vunpack.c.h.b16 %v904
    %v1682 = vunpack.c.l.b16 %v905
    %v1683 = vunpack.c.h.b16 %v905
    %v1684 = vunpack.c.l.b16 %v906
    %v1685 = vunpack.c.h.b16 %v906
    %v1686 = vunpack.c.l.b16 %v907
    %v1687 = vunpack.c.h.b16 %v907
    %v1688 = vunpack.c.l.b16 %v908
    %v1689 = vunpack.c.h.b16 %v908
    %v1690 = vunpack.c.l.b16 %v909
    %v1691 = vunpack.c.h.b16 %v909
    %v1692 = vunpack.c.l.b16 %v910
    %v1693 = vunpack.c.h.b16 %v910
    %v1694 = vunpack.c.l.b16 %v911
    %v1695 = vunpack.c.h.b16 %v911
    %v1696 = vunpack.c.l.b16 %v912
    %v1697 = vunpack.c.h.b16 %v912
    %v1698 = vunpack.c.l.b16 %v913
    %v1699 = vunpack.c.h.b16 %v913
    %v1700 = vunpack.c.l.b16 %v914
    %v1701 = vunpack.c.h.b16 %v914
    %v1702 = vunpack.c.l.b16 %v915
    %v1703 = vunpack.c.h.b16 %v915
    %v1704 = vunpack.c.l.b16 %v916
    %v1705 = vunpack.c.h.b16 %v916
    %v1706 = vunpack.c.l.b16 %v917
    %v1707 = vunpack.c.h.b16 %v917
    %v1708 = vunpack.c.l.b16 %v918
    %v1709 = vunpack.c.h.b16 %v918
    %v1710 = vunpack.c.l.b16 %v919
    %v1711 = vunpack.c.h.b16 %v919
    %v1712 = vunpack.c.l.b16 %v920
    %v1713 = vunpack.c.h.b16 %v920
    %v1714 = vunpack.c.l.b16 %v921
    %v1715 = vunpack.c.h.b16 %v921
    %v1716 = vunpack.c.l.b16 %v922
    %v1717 = vunpack.c.h.b16 %v922
    %v1718 = vunpack.c.l.b16 %v923
    %v1719 = vunpack.c.h.b16 %v923
    %v1720 = vunpack.c.l.b16 %v924
    %v1721 = vunpack.c.h.b16 %v924
    %v1722 = vunpack.c.l.b16 %v925
    %v1723 = vunpack.c.h.b16 %v925
    %v1724 = vunpack.c.l.b16 %v926
    %v1725 = vunpack.c.h.b16 %v926
    %v1726 = vunpack.c.l.b16 %v927
    %v1727 = vunpack.c.h.b16 %v927
    %v1728 = vunpack.c.l.b16 %v928
    %v1729 = vunpack.c.h.b16 %v928
    %v1730 = vunpack.c.l.b16 %v929
    %v1731 = vunpack.c.h.b16 %v929
    %v1732 = vunpack.c.l.b16 %v930
    %v1733 = vunpack.c.h.b16 %v930
    %v1734 = vunpack.c.l.b16 %v931
    %v1735 = vunpack.c.h.b16 %v931
    %v1736 = vunpack.c.l.b16 %v932
    %v1737 = vunpack.c.h.b16 %v932
    %v1738 = vunpack.c.l.b16 %v933
    %v1739 = vunpack.c.h.b16 %v933
    %v1740 = vunpack.c.l.b16 %v934
    %v1741 = vunpack.c.h.b16 %v934
    %v1742 = vunpack.c.l.b16 %v935
    %v1743 = vunpack.c.h.b16 %v935
    %v1744 = vunpack.c.l.b16 %v936
    %v1745 = vunpack.c.h.b16 %v936
    %v1746 = vunpack.c.l.b16 %v937
    %v1747 = vunpack.c.h.b16 %v937
    %v1748 = vpack.c.b16 %v1244, %v1236
    %v1749 = vpack.c.b16 %v1245, %v1237
    %v1750 = vpack.c.b16 %v1246, %v1238
    %v1751 = vpack.c.b16 %v1247, %v1239
    %v1752 = vpack.c.b16 %v1248, %v1240
    %v1753 = vpack.c.b16 %v1249, %v1241
    %v1754 = vpack.c.b16 %v1250, %v1242
    %v1755 = vpack.c.b16 %v1251, %v1243
    %v1756 = vpack.c.b16 %v1260, %v1252
    %v1757 = vpack.c.b16 %v1261, %v1253
    %v1758 = vpack.c.b16 %v1262, %v1254
    %v1759 = vpack.c.b16 %v1263, %v1255
    %v1760 = vpack.c.b16 %v1264, %v1256
    %v1761 = vpack.c.b16 %v1265, %v1257
    %v1762 = vpack.c.b16 %v1266, %v1258
    %v1763 = vpack.c.b16 %v1267, %v1259
    %v1764 = vpack.c.b16 %v1276, %v1268
    %v1765 = vpack.c.b16 %v1277, %v1269
    %v1766 = vpack.c.b16 %v1278, %v1270
    %v1767 = vpack.c.b16 %v1279, %v1271
    %v1768 = vpack.c.b16 %v1280, %v1272
    %v1769 = vpack.c.b16 %v1281, %v1273
    %v1770 = vpack.c.b16 %v1282, %v1274
    %v1771 = vpack.c.b16 %v1283, %v1275
    %v1772 = vpack.c.b16 %v1292, %v1284
    %v1773 = vpack.c.b16 %v1293, %v1285
    %v1774 = vpack.c.b16 %v1294, %v1286
    %v1775 = vpack.c.b16 %v1295, %v1287
    %v1776 = vpack.c.b16 %v1296, %v1288
    %v1777 = vpack.c.b16 %v1297, %v1289
    %v1778 = vpack.c.b16 %v1298, %v1290
    %v1779 = vpack.c.b16 %v1299, %v1291
    %v1780 = vpack.c.b16 %v1308, %v1300
    %v1781 = vpack.c.b16 %v1309, %v1301
    %v1782 = vpack.c.b16 %v1310, %v1302
    %v1783 = vpack.c.b16 %v1311, %v1303
    %v1784 = vpack.c.b16 %v1312, %v1304
    %v1785 = vpack.c.b16 %v1313, %v1305
    %v1786 = vpack.c.b16 %v1314, %v1306
    %v1787 = vpack.c.b16 %v1315, %v1307
    %v1788 = vpack.c.b16 %v1324, %v1316
    %v1789 = vpack.c.b16 %v1325, %v1317
    %v1790 = vpack.c.b16 %v1326, %v1318
    %v1791 = vpack.c.b16 %v1327, %v1319
    %v1792 = vpack.c.b16 %v1328, %v1320
    %v1793 = vpack.c.b16 %v1329, %v1321
    %v1794 = vpack.c.b16 %v1330, %v1322
    %v1795 = vpack.c.b16 %v1331, %v1323
    %v1796 = vpack.c.b16 %v1340, %v1332
    %v1797 = vpack.c.b16 %v1341, %v1333
    %v1798 = vpack.c.b16 %v1342, %v1334
    %v1799 = vpack.c.b16 %v1343, %v1335
    %v1800 = vpack.c.b16 %v1344, %v1336
    %v1801 = vpack.c.b16 %v1345, %v1337
    %v1802 = vpack.c.b16 %v1346, %v1338
    %v1803 = vpack.c.b16 %v1347, %v1339
    %v1804 = vpack.c.b16 %v1356, %v1348
    %v1805 = vpack.c.b16 %v1357, %v1349
    %v1806 = vpack.c.b16 %v1358, %v1350
    %v1807 = vpack.c.b16 %v1359, %v1351
    %v1808 = vpack.c.b16 %v1360, %v1352
    %v1809 = vpack.c.b16 %v1361, %v1353
    %v1810 = vpack.c.b16 %v1362, %v1354
    %v1811 = vpack.c.b16 %v1363, %v1355
    %v1812 = vpack.c.b16 %v1372, %v1364
    %v1813 = vpack.c.b16 %v1373, %v1365
    %v1814 = vpack.c.b16 %v1374, %v1366
    %v1815 = vpack.c.b16 %v1375, %v1367
    %v1816 = vpack.c.b16 %v1376, %v1368
    %v1817 = vpack.c.b16 %v1377, %v1369
    %v1818 = vpack.c.b16 %v1378, %v1370
    %v1819 = vpack.c.b16 %v1379, %v1371
    %v1820 = vpack.c.b16 %v1388, %v1380
    %v1821 = vpack.c.b16 %v1389, %v1381
    %v1822 = vpack.c.b16 %v1390, %v1382
    %v1823 = vpack.c.b16 %v1391, %v1383
    %v1824 = vpack.c.b16 %v1392, %v1384
    %v1825 = vpack.c.b16 %v1393, %v1385
    %v1826 = vpack.c.b16 %v1394, %v1386
    %v1827 = vpack.c.b16 %v1395, %v1387
    %v1828 = vpack.c.b16 %v1404, %v1396
    %v1829 = vpack.c.b16 %v1405, %v1397
    %v1830 = vpack.c.b16 %v1406, %v1398
    %v1831 = vpack.c.b16 %v1407, %v1399
    %v1832 = vpack.c.b16 %v1408, %v1400
    %v1833 = vpack.c.b16 %v1409, %v1401
    %v1834 = vpack.c.b16 %v1410, %v1402
    %v1835 = vpack.c.b16 %v1411, %v1403
    %v1836 = vpack.c.b16 %v1420, %v1412
    %v1837 = vpack.c.b16 %v1421, %v1413
    %v1838 = vpack.c.b16 %v1422, %v1414
    %v1839 = vpack.c.b16 %v1423, %v1415
    %v1840 = vpack.c.b16 %v1424, %v1416
    %v1841 = vpack.c.b16 %v1425, %v1417
    %v1842 = vpack.c.b16 %v1426, %v1418
    %v1843 = vpack.c.b16 %v1427, %v1419
    %v1844 = vpack.c.b16 %v1436, %v1428
    %v1845 = vpack.c.b16 %v1437, %v1429
    %v1846 = vpack.c.b16 %v1438, %v1430
    %v1847 = vpack.c.b16 %v1439, %v1431
    %v1848 = vpack.c.b16 %v1440, %v1432
    %v1849 = vpack.c.b16 %v1441, %v1433
    %v1850 = vpack.c.b16 %v1442, %v1434
    %v1851 = vpack.c.b16 %v1443, %v1435
    %v1852 = vpack.c.b16 %v1452, %v1444
    %v1853 = vpack.c.b16 %v1453, %v1445
    %v1854 = vpack.c.b16 %v1454, %v1446
    %v1855 = vpack.c.b16 %v1455, %v1447
    %v1856 = vpack.c.b16 %v1456, %v1448
    %v1857 = vpack.c.b16 %v1457, %v1449
    %v1858 = vpack.c.b16 %v1458, %v1450
    %v1859 = vpack.c.b16 %v1459, %v1451
    %v1860 = vpack.c.b16 %v1468, %v1460
    %v1861 = vpack.c.b16 %v1469, %v1461
    %v1862 = vpack.c.b16 %v1470, %v1462
    %v1863 = vpack.c.b16 %v1471, %v1463
    %v1864 = vpack.c.b16 %v1472, %v1464
    %v1865 = vpack.c.b16 %v1473, %v1465
    %v1866 = vpack.c.b16 %v1474, %v1466
    %v1867 = vpack.c.b16 %v1475, %v1467
    %v1868 = vpack.c.b16 %v1484, %v1476
    %v1869 = vpack.c.b16 %v1485, %v1477
    %v1870 = vpack.c.b16 %v1486, %v1478
    %v1871 = vpack.c.b16 %v1487, %v1479
    %v1872 = vpack.c.b16 %v1488, %v1480
    %v1873 = vpack.c.b16 %v1489, %v1481
    %v1874 = vpack.c.b16 %v1490, %v1482
    %v1875 = vpack.c.b16 %v1491, %v1483
    %v1876 = vpack.c.b16 %v1500, %v1492
    %v1877 = vpack.c.b16 %v1501, %v1493
    %v1878 = vpack.c.b16 %v1502, %v1494
    %v1879 = vpack.c.b16 %v1503, %v1495
    %v1880 = vpack.c.b16 %v1504, %v1496
    %v1881 = vpack.c.b16 %v1505, %v1497
    %v1882 = vpack.c.b16 %v1506, %v1498
    %v1883 = vpack.c.b16 %v1507, %v1499
    %v1884 = vpack.c.b16 %v1516, %v1508
    %v1885 = vpack.c.b16 %v1517, %v1509
    %v1886 = vpack.c.b16 %v1518, %v1510
    %v1887 = vpack.c.b16 %v1519, %v1511
    %v1888 = vpack.c.b16 %v1520, %v1512
    %v1889 = vpack.c.b16 %v1521, %v1513
    %v1890 = vpack.c.b16 %v1522, %v1514
    %v1891 = vpack.c.b16 %v1523, %v1515
    %v1892 = vpack.c.b16 %v1532, %v1524
    %v1893 = vpack.c.b16 %v1533, %v1525
    %v1894 = vpack.c.b16 %v1534, %v1526
    %v1895 = vpack.c.b16 %v1535, %v1527
    %v1896 = vpack.c.b16 %v1536, %v1528
    %v1897 = vpack.c.b16 %v1537, %v1529
    %v1898 = vpack.c.b16 %v1538, %v1530
    %v1899 = vpack.c.b16 %v1539, %v1531
    %v1900 = vpack.c.b16 %v1548, %v1540
    %v1901 = vpack.c.b16 %v1549, %v1541
    %v1902 = vpack.c.b16 %v1550, %v1542
    %v1903 = vpack.c.b16 %v1551, %v1543
    %v1904 = vpack.c.b16 %v1552, %v1544
    %v1905 = vpack.c.b16 %v1553, %v1545
    %v1906 = vpack.c.b16 %v1554, %v1546
    %v1907 = vpack.c.b16 %v1555, %v1547
    %v1908 = vpack.c.b16 %v1564, %v1556
    %v1909 = vpack.c.b16 %v1565, %v1557
    %v1910 = vpack.c.b16 %v1566, %v1558
    %v1911 = vpack.c.b16 %v1567, %v1559
    %v1912 = vpack.c.b16 %v1568, %v1560
    %v1913 = vpack.c.b16 %v1569, %v1561
    %v1914 = vpack.c.b16 %v1570, %v1562
    %v1915 = vpack.c.b16 %v1571, %v1563
    %v1916 = vpack.c.b16 %v1580, %v1572
    %v1917 = vpack.c.b16 %v1581, %v1573
    %v1918 = vpack.c.b16 %v1582, %v1574
    %v1919 = vpack.c.b16 %v1583, %v1575
    %v1920 = vpack.c.b16 %v1584, %v1576
    %v1921 = vpack.c.b16 %v1585, %v1577
    %v1922 = vpack.c.b16 %v1586, %v1578
    %v1923 = vpack.c.b16 %v1587, %v1579
    %v1924 = vpack.c.b16 %v1596, %v1588
    %v1925 = vpack.c.b16 %v1597, %v1589
    %v1926 = vpack.c.b16 %v1598, %v1590
    %v1927 = vpack.c.b16 %v1599, %v1591
    %v1928 = vpack.c.b16 %v1600, %v1592
    %v1929 = vpack.c.b16 %v1601, %v1593
    %v1930 = vpack.c.b16 %v1602, %v1594
    %v1931 = vpack.c.b16 %v1603, %v1595
    %v1932 = vpack.c.b16 %v1612, %v1604
    %v1933 = vpack.c.b16 %v1613, %v1605
    %v1934 = vpack.c.b16 %v1614, %v1606
    %v1935 = vpack.c.b16 %v1615, %v1607
    %v1936 = vpack.c.b16 %v1616, %v1608
    %v1937 = vpack.c.b16 %v1617, %v1609
    %v1938 = vpack.c.b16 %v1618, %v1610
    %v1939 = vpack.c.b16 %v1619, %v1611
    %v1940 = vpack.c.b16 %v1628, %v1620
    %v1941 = vpack.c.b16 %v1629, %v1621
    %v1942 = vpack.c.b16 %v1630, %v1622
    %v1943 = vpack.c.b16 %v1631, %v1623
    %v1944 = vpack.c.b16 %v1632, %v1624
    %v1945 = vpack.c.b16 %v1633, %v1625
    %v1946 = vpack.c.b16 %v1634, %v1626
    %v1947 = vpack.c.b16 %v1635, %v1627
    %v1948 = vpack.c.b16 %v1644, %v1636
    %v1949 = vpack.c.b16 %v1645, %v1637
    %v1950 = vpack.c.b16 %v1646, %v1638
    %v1951 = vpack.c.b16 %v1647, %v1639
    %v1952 = vpack.c.b16 %v1648, %v1640
    %v1953 = vpack.c.b16 %v1649, %v1641
    %v1954 = vpack.c.b16 %v1650, %v1642
    %v1955 = vpack.c.b16 %v1651, %v1643
    %v1956 = vpack.c.b16 %v1660, %v1652
    %v1957 = vpack.c.b16 %v1661, %v1653
    %v1958 = vpack.c.b16 %v1662, %v1654
    %v1959 = vpack.c.b16 %v1663, %v1655
    %v1960 = vpack.c.b16 %v1664, %v1656
    %v1961 = vpack.c.b16 %v1665, %v1657
    %v1962 = vpack.c.b16 %v1666, %v1658
    %v1963 = vpack.c.b16 %v1667, %v1659
    %v1964 = vpack.c.b16 %v1676, %v1668
    %v1965 = vpack.c.b16 %v1677, %v1669
    %v1966 = vpack.c.b16 %v1678, %v1670
    %v1967 = vpack.c.b16 %v1679, %v1671
    %v1968 = vpack.c.b16 %v1680, %v1672
    %v1969 = vpack.c.b16 %v1681, %v1673
    %v1970 = vpack.c.b16 %v1682, %v1674
    %v1971 = vpack.c.b16 %v1683, %v1675
    %v1972 = vpack.c.b16 %v1692, %v1684
    %v1973 = vpack.c.b16 %v1693, %v1685
    %v1974 = vpack.c.b16 %v1694, %v1686
    %v1975 = vpack.c.b16 %v1695, %v1687
    %v1976 = vpack.c.b16 %v1696, %v1688
    %v1977 = vpack.c.b16 %v1697, %v1689
    %v1978 = vpack.c.b16 %v1698, %v1690
    %v1979 = vpack.c.b16 %v1699, %v1691
    %v1980 = vpack.c.b16 %v1708, %v1700
    %v1981 = vpack.c.b16 %v1709, %v1701
    %v1982 = vpack.c.b16 %v1710, %v1702
    %v1983 = vpack.c.b16 %v1711, %v1703
    %v1984 = vpack.c.b16 %v1712, %v1704
    %v1985 = vpack.c.b16 %v1713, %v1705
    %v1986 = vpack.c.b16 %v1714, %v1706
    %v1987 = vpack.c.b16 %v1715, %v1707
    %v1988 = vpack.c.b16 %v1724, %v1716
    %v1989 = vpack.c.b16 %v1725, %v1717
    %v1990 = vpack.c.b16 %v1726, %v1718
    %v1991 = vpack.c.b16 %v1727, %v1719
    %v1992 = vpack.c.b16 %v1728, %v1720
    %v1993 = vpack.c.b16 %v1729, %v1721
    %v1994 = vpack.c.b16 %v1730, %v1722
    %v1995 = vpack.c.b16 %v1731, %v1723
    %v1996 = vpack.c.b16 %v1740, %v1732
    %v1997 = vpack.c.b16 %v1741, %v1733
    %v1998 = vpack.c.b16 %v1742, %v1734
    %v1999 = vpack.c.b16 %v1743, %v1735
    %v2000 = vpack.c.b16 %v1744, %v1736
    %v2001 = vpack.c.b16 %v1745, %v1737
    %v2002 = vpack.c.b16 %v1746, %v1738
    %v2003 = vpack.c.b16 %v1747, %v1739
    %2260 = vmatprep.subr.bf16.mxu0 %v1749
    %2261 = vmatpush1.bf16.msra.mxu0 %v1748
    %2262 = vmatprep.subr.bf16.mxu0 %v1757
    %2263 = vmatpush1.bf16.msra.mxu0 %v1756
    %2264 = vmatprep.subr.bf16.mxu0 %v1765
    %2265 = vmatpush1.bf16.msra.mxu0 %v1764
    %2266 = vmatprep.subr.bf16.mxu0 %v1773
    %2267 = vmatpush1.bf16.msra.mxu0 %v1772
    %2268 = vmatprep.subr.bf16.mxu0 %v1781
    %2269 = vmatpush1.bf16.msra.mxu0 %v1780
    %2270 = vmatprep.subr.bf16.mxu0 %v1789
    %2271 = vmatpush1.bf16.msra.mxu0 %v1788
    %2272 = vmatprep.subr.bf16.mxu0 %v1797
    %2273 = vmatpush1.bf16.msra.mxu0 %v1796
    %2274 = vmatprep.subr.bf16.mxu0 %v1805
    %2275 = vmatpush1.bf16.msra.mxu0 %v1804
    %2276 = vmatprep.subr.bf16.mxu0 %v1813
    %2277 = vmatpush1.bf16.msra.mxu0 %v1812
    %2278 = vmatprep.subr.bf16.mxu0 %v1821
    %2279 = vmatpush1.bf16.msra.mxu0 %v1820
    %2280 = vmatprep.subr.bf16.mxu0 %v1829
    %2281 = vmatpush1.bf16.msra.mxu0 %v1828
    %2282 = vmatprep.subr.bf16.mxu0 %v1837
    %2283 = vmatpush1.bf16.msra.mxu0 %v1836
    %2284 = vmatprep.subr.bf16.mxu0 %v1845
    %2285 = vmatpush1.bf16.msra.mxu0 %v1844
    %2286 = vmatprep.subr.bf16.mxu0 %v1853
    %2287 = vmatpush1.bf16.msra.mxu0 %v1852
    %2288 = vmatprep.subr.bf16.mxu0 %v1861
    %2289 = vmatpush1.bf16.msra.mxu0 %v1860
    %2290 = vmatprep.subr.bf16.mxu0 %v1869
    %2291 = vmatpush1.bf16.msra.mxu0 %v1868
    %2292 = vmatprep.mubr.bf16.mxu0 %v679
    %2293 = vmatmul.mubr.bf16.gmra.mrb[0].mxu0 %v678
    %v2294 = vpop.f32.mrb[0].mxu0
    %v2295 = vadd.f32 %v943, %v2294
    %v2296 = vpop.f32.mrb[0].mxu0
    %v2297 = vadd.f32 %v947, %v2296
    %v2298 = vpop.f32.mrb[0].mxu0
    %v2299 = vpop.f32.mrb[0].mxu0
    %2300 = vdwg.mxu0
    %2301 = vmatprep.subr.bf16.mxu0 %v1877
    %2302 = vmatpush1.bf16.msra.mxu0 %v1876
    %2303 = vmatprep.subr.bf16.mxu0 %v1885
    %2304 = vmatpush1.bf16.msra.mxu0 %v1884
    %2305 = vmatprep.subr.bf16.mxu0 %v1893
    %2306 = vmatpush1.bf16.msra.mxu0 %v1892
    %2307 = vmatprep.subr.bf16.mxu0 %v1901
    %2308 = vmatpush1.bf16.msra.mxu0 %v1900
    %2309 = vmatprep.subr.bf16.mxu0 %v1909
    %2310 = vmatpush1.bf16.msra.mxu0 %v1908
    %2311 = vmatprep.subr.bf16.mxu0 %v1917
    %2312 = vmatpush1.bf16.msra.mxu0 %v1916
    %2313 = vmatprep.subr.bf16.mxu0 %v1925
    %2314 = vmatpush1.bf16.msra.mxu0 %v1924
    %2315 = vmatprep.subr.bf16.mxu0 %v1933
    %2316 = vmatpush1.bf16.msra.mxu0 %v1932
    %2317 = vmatprep.subr.bf16.mxu0 %v1941
    %2318 = vmatpush1.bf16.msra.mxu0 %v1940
    %2319 = vmatprep.subr.bf16.mxu0 %v1949
    %2320 = vmatpush1.bf16.msra.mxu0 %v1948
    %2321 = vmatprep.subr.bf16.mxu0 %v1957
    %2322 = vmatpush1.bf16.msra.mxu0 %v1956
    %2323 = vmatprep.subr.bf16.mxu0 %v1965
    %2324 = vmatpush1.bf16.msra.mxu0 %v1964
    %2325 = vmatprep.subr.bf16.mxu0 %v1973
    %2326 = vmatpush1.bf16.msra.mxu0 %v1972
    %2327 = vmatprep.subr.bf16.mxu0 %v1981
    %2328 = vmatpush1.bf16.msra.mxu0 %v1980
    %2329 = vmatprep.subr.bf16.mxu0 %v1989
    %2330 = vmatpush1.bf16.msra.mxu0 %v1988
    %2331 = vmatprep.subr.bf16.mxu0 %v1997
    %2332 = vmatpush1.bf16.msra.mxu0 %v1996
    %2333 = vmatprep.mubr.bf16.mxu0 %v681
    %2334 = vmatmul.mubr.bf16.gmra.mrb[0].mxu0 %v680
    %v2335 = vpop.f32.mrb[0].mxu0
    %v2336 = vadd.f32 %v2295, %v2335
    %v2337 = vpop.f32.mrb[0].mxu0
    %v2338 = vadd.f32 %v2297, %v2337
    %v2339 = vpop.f32.mrb[0].mxu0
    %v2340 = vpop.f32.mrb[0].mxu0
    %2341 = vdwg.mxu0
    %2342 = vmatprep.subr.bf16.mxu0 %v1751
    %2343 = vmatpush1.bf16.msra.mxu0 %v1750
    %2344 = vmatprep.subr.bf16.mxu0 %v1759
    %2345 = vmatpush1.bf16.msra.mxu0 %v1758
    %2346 = vmatprep.subr.bf16.mxu0 %v1767
    %2347 = vmatpush1.bf16.msra.mxu0 %v1766
    %2348 = vmatprep.subr.bf16.mxu0 %v1775
    %2349 = vmatpush1.bf16.msra.mxu0 %v1774
    %2350 = vmatprep.subr.bf16.mxu0 %v1783
    %2351 = vmatpush1.bf16.msra.mxu0 %v1782
    %2352 = vmatprep.subr.bf16.mxu0 %v1791
    %2353 = vmatpush1.bf16.msra.mxu0 %v1790
    %2354 = vmatprep.subr.bf16.mxu0 %v1799
    %2355 = vmatpush1.bf16.msra.mxu0 %v1798
    %2356 = vmatprep.subr.bf16.mxu0 %v1807
    %2357 = vmatpush1.bf16.msra.mxu0 %v1806
    %2358 = vmatprep.subr.bf16.mxu0 %v1815
    %2359 = vmatpush1.bf16.msra.mxu0 %v1814
    %2360 = vmatprep.subr.bf16.mxu0 %v1823
    %2361 = vmatpush1.bf16.msra.mxu0 %v1822
    %2362 = vmatprep.subr.bf16.mxu0 %v1831
    %2363 = vmatpush1.bf16.msra.mxu0 %v1830
    %2364 = vmatprep.subr.bf16.mxu0 %v1839
    %2365 = vmatpush1.bf16.msra.mxu0 %v1838
    %2366 = vmatprep.subr.bf16.mxu0 %v1847
    %2367 = vmatpush1.bf16.msra.mxu0 %v1846
    %2368 = vmatprep.subr.bf16.mxu0 %v1855
    %2369 = vmatpush1.bf16.msra.mxu0 %v1854
    %2370 = vmatprep.subr.bf16.mxu0 %v1863
    %2371 = vmatpush1.bf16.msra.mxu0 %v1862
    %2372 = vmatprep.subr.bf16.mxu0 %v1871
    %2373 = vmatpush1.bf16.msra.mxu0 %v1870
    %2374 = vmatprep.mubr.bf16.mxu0 %v679
    %2375 = vmatmul.mubr.bf16.gmra.mrb[0].mxu0 %v678
    %v2376 = vpop.f32.mrb[0].mxu0
    %v2377 = vadd.f32 %v951, %v2376
    %v2378 = vpop.f32.mrb[0].mxu0
    %v2379 = vadd.f32 %v955, %v2378
    %v2380 = vpop.f32.mrb[0].mxu0
    %v2381 = vpop.f32.mrb[0].mxu0
    %2382 = vdwg.mxu0
    %2383 = vmatprep.subr.bf16.mxu0 %v1879
    %2384 = vmatpush1.bf16.msra.mxu0 %v1878
    %2385 = vmatprep.subr.bf16.mxu0 %v1887
    %2386 = vmatpush1.bf16.msra.mxu0 %v1886
    %2387 = vmatprep.subr.bf16.mxu0 %v1895
    %2388 = vmatpush1.bf16.msra.mxu0 %v1894
    %2389 = vmatprep.subr.bf16.mxu0 %v1903
    %2390 = vmatpush1.bf16.msra.mxu0 %v1902
    %2391 = vmatprep.subr.bf16.mxu0 %v1911
    %2392 = vmatpush1.bf16.msra.mxu0 %v1910
    %2393 = vmatprep.subr.bf16.mxu0 %v1919
    %2394 = vmatpush1.bf16.msra.mxu0 %v1918
    %2395 = vmatprep.subr.bf16.mxu0 %v1927
    %2396 = vmatpush1.bf16.msra.mxu0 %v1926
    %2397 = vmatprep.subr.bf16.mxu0 %v1935
    %2398 = vmatpush1.bf16.msra.mxu0 %v1934
    %2399 = vmatprep.subr.bf16.mxu0 %v1943
    %2400 = vmatpush1.bf16.msra.mxu0 %v1942
    %2401 = vmatprep.subr.bf16.mxu0 %v1951
    %2402 = vmatpush1.bf16.msra.mxu0 %v1950
    %2403 = vmatprep.subr.bf16.mxu0 %v1959
    %2404 = vmatpush1.bf16.msra.mxu0 %v1958
    %2405 = vmatprep.subr.bf16.mxu0 %v1967
    %2406 = vmatpush1.bf16.msra.mxu0 %v1966
    %2407 = vmatprep.subr.bf16.mxu0 %v1975
    %2408 = vmatpush1.bf16.msra.mxu0 %v1974
    %2409 = vmatprep.subr.bf16.mxu0 %v1983
    %2410 = vmatpush1.bf16.msra.mxu0 %v1982
    %2411 = vmatprep.subr.bf16.mxu0 %v1991
    %2412 = vmatpush1.bf16.msra.mxu0 %v1990
    %2413 = vmatprep.subr.bf16.mxu0 %v1999
    %2414 = vmatpush1.bf16.msra.mxu0 %v1998
    %2415 = vmatprep.mubr.bf16.mxu0 %v681
    %2416 = vmatmul.mubr.bf16.gmra.mrb[0].mxu0 %v680
    %v2417 = vpop.f32.mrb[0].mxu0
    %v2418 = vadd.f32 %v2377, %v2417
    %v2419 = vpop.f32.mrb[0].mxu0
    %v2420 = vadd.f32 %v2379, %v2419
    %v2421 = vpop.f32.mrb[0].mxu0
    %v2422 = vpop.f32.mrb[0].mxu0
    %2423 = vdwg.mxu0
    %2424 = vmatprep.subr.bf16.mxu0 %v1753
    %2425 = vmatpush1.bf16.msra.mxu0 %v1752
    %2426 = vmatprep.subr.bf16.mxu0 %v1761
    %2427 = vmatpush1.bf16.msra.mxu0 %v1760
    %2428 = vmatprep.subr.bf16.mxu0 %v1769
    %2429 = vmatpush1.bf16.msra.mxu0 %v1768
    %2430 = vmatprep.subr.bf16.mxu0 %v1777
    %2431 = vmatpush1.bf16.msra.mxu0 %v1776
    %2432 = vmatprep.subr.bf16.mxu0 %v1785
    %2433 = vmatpush1.bf16.msra.mxu0 %v1784
    %2434 = vmatprep.subr.bf16.mxu0 %v1793
    %2435 = vmatpush1.bf16.msra.mxu0 %v1792
    %2436 = vmatprep.subr.bf16.mxu0 %v1801
    %2437 = vmatpush1.bf16.msra.mxu0 %v1800
    %2438 = vmatprep.subr.bf16.mxu0 %v1809
    %2439 = vmatpush1.bf16.msra.mxu0 %v1808
    %2440 = vmatprep.subr.bf16.mxu0 %v1817
    %2441 = vmatpush1.bf16.msra.mxu0 %v1816
    %2442 = vmatprep.subr.bf16.mxu0 %v1825
    %2443 = vmatpush1.bf16.msra.mxu0 %v1824
    %2444 = vmatprep.subr.bf16.mxu0 %v1833
    %2445 = vmatpush1.bf16.msra.mxu0 %v1832
    %2446 = vmatprep.subr.bf16.mxu0 %v1841
    %2447 = vmatpush1.bf16.msra.mxu0 %v1840
    %2448 = vmatprep.subr.bf16.mxu0 %v1849
    %2449 = vmatpush1.bf16.msra.mxu0 %v1848
    %2450 = vmatprep.subr.bf16.mxu0 %v1857
    %2451 = vmatpush1.bf16.msra.mxu0 %v1856
    %2452 = vmatprep.subr.bf16.mxu0 %v1865
    %2453 = vmatpush1.bf16.msra.mxu0 %v1864
    %2454 = vmatprep.subr.bf16.mxu0 %v1873
    %2455 = vmatpush1.bf16.msra.mxu0 %v1872
    %2456 = vmatprep.mubr.bf16.mxu0 %v679
    %2457 = vmatmul.mubr.bf16.gmra.mrb[0].mxu0 %v678
    %v2458 = vpop.f32.mrb[0].mxu0
    %v2459 = vadd.f32 %v959, %v2458
    %v2460 = vpop.f32.mrb[0].mxu0
    %v2461 = vadd.f32 %v963, %v2460
    %v2462 = vpop.f32.mrb[0].mxu0
    %v2463 = vpop.f32.mrb[0].mxu0
    %2464 = vdwg.mxu0
    %2465 = vmatprep.subr.bf16.mxu0 %v1881
    %2466 = vmatpush1.bf16.msra.mxu0 %v1880
    %2467 = vmatprep.subr.bf16.mxu0 %v1889
    %2468 = vmatpush1.bf16.msra.mxu0 %v1888
    %2469 = vmatprep.subr.bf16.mxu0 %v1897
    %2470 = vmatpush1.bf16.msra.mxu0 %v1896
    %2471 = vmatprep.subr.bf16.mxu0 %v1905
    %2472 = vmatpush1.bf16.msra.mxu0 %v1904
    %2473 = vmatprep.subr.bf16.mxu0 %v1913
    %2474 = vmatpush1.bf16.msra.mxu0 %v1912
    %2475 = vmatprep.subr.bf16.mxu0 %v1921
    %2476 = vmatpush1.bf16.msra.mxu0 %v1920
    %2477 = vmatprep.subr.bf16.mxu0 %v1929
    %2478 = vmatpush1.bf16.msra.mxu0 %v1928
    %2479 = vmatprep.subr.bf16.mxu0 %v1937
    %2480 = vmatpush1.bf16.msra.mxu0 %v1936
    %2481 = vmatprep.subr.bf16.mxu0 %v1945
    %2482 = vmatpush1.bf16.msra.mxu0 %v1944
    %2483 = vmatprep.subr.bf16.mxu0 %v1953
    %2484 = vmatpush1.bf16.msra.mxu0 %v1952
    %2485 = vmatprep.subr.bf16.mxu0 %v1961
    %2486 = vmatpush1.bf16.msra.mxu0 %v1960
    %2487 = vmatprep.subr.bf16.mxu0 %v1969
    %2488 = vmatpush1.bf16.msra.mxu0 %v1968
    %2489 = vmatprep.subr.bf16.mxu0 %v1977
    %2490 = vmatpush1.bf16.msra.mxu0 %v1976
    %2491 = vmatprep.subr.bf16.mxu0 %v1985
    %2492 = vmatpush1.bf16.msra.mxu0 %v1984
    %2493 = vmatprep.subr.bf16.mxu0 %v1993
    %2494 = vmatpush1.bf16.msra.mxu0 %v1992
    %2495 = vmatprep.subr.bf16.mxu0 %v2001
    %2496 = vmatpush1.bf16.msra.mxu0 %v2000
    %2497 = vmatprep.mubr.bf16.mxu0 %v681
    %2498 = vmatmul.mubr.bf16.gmra.mrb[0].mxu0 %v680
    %v2499 = vpop.f32.mrb[0].mxu0
    %v2500 = vadd.f32 %v2459, %v2499
    %v2501 = vpop.f32.mrb[0].mxu0
    %v2502 = vadd.f32 %v2461, %v2501
    %v2503 = vpop.f32.mrb[0].mxu0
    %v2504 = vpop.f32.mrb[0].mxu0
    %2505 = vdwg.mxu0
    %2506 = vmatprep.subr.bf16.mxu0 %v1755
    %2507 = vmatpush1.bf16.msra.mxu0 %v1754
    %2508 = vmatprep.subr.bf16.mxu0 %v1763
    %2509 = vmatpush1.bf16.msra.mxu0 %v1762
    %2510 = vmatprep.subr.bf16.mxu0 %v1771
    %2511 = vmatpush1.bf16.msra.mxu0 %v1770
    %2512 = vmatprep.subr.bf16.mxu0 %v1779
    %2513 = vmatpush1.bf16.msra.mxu0 %v1778
    %2514 = vmatprep.subr.bf16.mxu0 %v1787
    %2515 = vmatpush1.bf16.msra.mxu0 %v1786
    %2516 = vmatprep.subr.bf16.mxu0 %v1795
    %2517 = vmatpush1.bf16.msra.mxu0 %v1794
    %2518 = vmatprep.subr.bf16.mxu0 %v1803
    %2519 = vmatpush1.bf16.msra.mxu0 %v1802
    %2520 = vmatprep.subr.bf16.mxu0 %v1811
    %2521 = vmatpush1.bf16.msra.mxu0 %v1810
    %2522 = vmatprep.subr.bf16.mxu0 %v1819
    %2523 = vmatpush1.bf16.msra.mxu0 %v1818
    %2524 = vmatprep.subr.bf16.mxu0 %v1827
    %2525 = vmatpush1.bf16.msra.mxu0 %v1826
    %2526 = vmatprep.subr.bf16.mxu0 %v1835
    %2527 = vmatpush1.bf16.msra.mxu0 %v1834
    %2528 = vmatprep.subr.bf16.mxu0 %v1843
    %2529 = vmatpush1.bf16.msra.mxu0 %v1842
    %2530 = vmatprep.subr.bf16.mxu0 %v1851
    %2531 = vmatpush1.bf16.msra.mxu0 %v1850
    %2532 = vmatprep.subr.bf16.mxu0 %v1859
    %2533 = vmatpush1.bf16.msra.mxu0 %v1858
    %2534 = vmatprep.subr.bf16.mxu0 %v1867
    %2535 = vmatpush1.bf16.msra.mxu0 %v1866
    %2536 = vmatprep.subr.bf16.mxu0 %v1875
    %2537 = vmatpush1.bf16.msra.mxu0 %v1874
    %2538 = vmatprep.mubr.bf16.mxu0 %v679
    %2539 = vmatmul.mubr.bf16.gmra.mrb[0].mxu0 %v678
    %v2540 = vpop.f32.mrb[0].mxu0
    %v2541 = vadd.f32 %v967, %v2540
    %v2542 = vpop.f32.mrb[0].mxu0
    %v2543 = vadd.f32 %v971, %v2542
    %v2544 = vpop.f32.mrb[0].mxu0
    %v2545 = vpop.f32.mrb[0].mxu0
    %2546 = vdwg.mxu0
    %2547 = vmatprep.subr.bf16.mxu0 %v1883
    %2548 = vmatpush1.bf16.msra.mxu0 %v1882
    %2549 = vmatprep.subr.bf16.mxu0 %v1891
    %2550 = vmatpush1.bf16.msra.mxu0 %v1890
    %2551 = vmatprep.subr.bf16.mxu0 %v1899
    %2552 = vmatpush1.bf16.msra.mxu0 %v1898
    %2553 = vmatprep.subr.bf16.mxu0 %v1907
    %2554 = vmatpush1.bf16.msra.mxu0 %v1906
    %2555 = vmatprep.subr.bf16.mxu0 %v1915
    %2556 = vmatpush1.bf16.msra.mxu0 %v1914
    %2557 = vmatprep.subr.bf16.mxu0 %v1923
    %2558 = vmatpush1.bf16.msra.mxu0 %v1922
    %2559 = vmatprep.subr.bf16.mxu0 %v1931
    %2560 = vmatpush1.bf16.msra.mxu0 %v1930
    %2561 = vmatprep.subr.bf16.mxu0 %v1939
    %2562 = vmatpush1.bf16.msra.mxu0 %v1938
    %2563 = vmatprep.subr.bf16.mxu0 %v1947
    %2564 = vmatpush1.bf16.msra.mxu0 %v1946
    %2565 = vmatprep.subr.bf16.mxu0 %v1955
    %2566 = vmatpush1.bf16.msra.mxu0 %v1954
    %2567 = vmatprep.subr.bf16.mxu0 %v1963
    %2568 = vmatpush1.bf16.msra.mxu0 %v1962
    %2569 = vmatprep.subr.bf16.mxu0 %v1971
    %2570 = vmatpush1.bf16.msra.mxu0 %v1970
    %2571 = vmatprep.subr.bf16.mxu0 %v1979
    %2572 = vmatpush1.bf16.msra.mxu0 %v1978
    %2573 = vmatprep.subr.bf16.mxu0 %v1987
    %2574 = vmatpush1.bf16.msra.mxu0 %v1986
    %2575 = vmatprep.subr.bf16.mxu0 %v1995
    %2576 = vmatpush1.bf16.msra.mxu0 %v1994
    %2577 = vmatprep.subr.bf16.mxu0 %v2003
    %2578 = vmatpush1.bf16.msra.mxu0 %v2002
    %2579 = vmatprep.mubr.bf16.mxu0 %v681
    %2580 = vmatmul.mubr.bf16.gmra.mrb[0].mxu0 %v680
    %v2581 = vpop.f32.mrb[0].mxu0
    %v2582 = vadd.f32 %v2541, %v2581
    %v2583 = vpop.f32.mrb[0].mxu0
    %v2584 = vadd.f32 %v2543, %v2583
    %v2585 = vpop.f32.mrb[0].mxu0
    %v2586 = vpop.f32.mrb[0].mxu0
    %2587 = vdwg.mxu0
    %vm2588 = vcmp.gt.f32.partialorder %v2336, 0.0
    %vm2589 = vcmp.gt.f32.partialorder %v2338, 0.0
    %vm2590 = vcmp.gt.f32.partialorder %v2418, 0.0
    %vm2591 = vcmp.gt.f32.partialorder %v2420, 0.0
    %vm2592 = vcmp.gt.f32.partialorder %v2500, 0.0
    %vm2593 = vcmp.gt.f32.partialorder %v2502, 0.0
    %vm2594 = vcmp.gt.f32.partialorder %v2582, 0.0
    %vm2595 = vcmp.gt.f32.partialorder %v2584, 0.0
    %v2596 = vmul.f32 %v2336, 0.2
    %v2597 = vmul.f32 %v2338, 0.2
    %v2598 = vmul.f32 %v2418, 0.2
    %v2599 = vmul.f32 %v2420, 0.2
    %v2600 = vmul.f32 %v2500, 0.2
    %v2601 = vmul.f32 %v2502, 0.2
    %v2602 = vmul.f32 %v2582, 0.2
    %v2603 = vmul.f32 %v2584, 0.2
    %v2604 = vsel %vm2588, %v2336, %v2596
    %v2605 = vsel %vm2589, %v2338, %v2597
    %v2606 = vsel %vm2590, %v2418, %v2598
    %v2607 = vsel %vm2591, %v2420, %v2599
    %v2608 = vsel %vm2592, %v2500, %v2600
    %v2609 = vsel %vm2593, %v2502, %v2601
    %v2610 = vsel %vm2594, %v2582, %v2602
    %v2611 = vsel %vm2595, %v2584, %v2603
    %v2612 = vpack.c.bf16 %v2604, %v2604
    %v2613 = vpack.c.bf16 %v2605, %v2605
    %v2614 = vpack.c.bf16 %v2606, %v2606
    %v2615 = vpack.c.bf16 %v2607, %v2607
    %v2616 = vpack.c.bf16 %v2608, %v2608
    %v2617 = vpack.c.bf16 %v2609, %v2609
    %v2618 = vpack.c.bf16 %v2610, %v2610
    %v2619 = vpack.c.bf16 %v2611, %v2611
    %v2620 = vld [vmem:[#allocation10] sm:$0xf]
    %v2621 = vld [vmem:[#allocation10 + $0x4] sm:$0xf]
    %v2622 = vld [vmem:[#allocation10 + $0x8] sm:$0xf]
    %v2623 = vld [vmem:[#allocation10 + $0xc] sm:$0xf]
    %v2624 = vld [vmem:[#allocation10 + $0x10] sm:$0xf]
    %v2625 = vld [vmem:[#allocation10 + $0x14] sm:$0xf]
    %v2626 = vld [vmem:[#allocation10 + $0x18] sm:$0xf]
    %v2627 = vld [vmem:[#allocation10 + $0x1c] sm:$0xf]
    %v2628 = vld [vmem:[#allocation10 + $0x20] sm:$0xf]
    %v2629 = vld [vmem:[#allocation10 + $0x24] sm:$0xf]
    %v2630 = vld [vmem:[#allocation10 + $0x28] sm:$0xf]
    %v2631 = vld [vmem:[#allocation10 + $0x2c] sm:$0xf]
    %v2632 = vld [vmem:[#allocation10 + $0x30] sm:$0xf]
    %v2633 = vld [vmem:[#allocation10 + $0x34] sm:$0xf]
    %v2634 = vld [vmem:[#allocation10 + $0x38] sm:$0xf]
    %v2635 = vld [vmem:[#allocation10 + $0x3c] sm:$0xf]
    %v2636 = vld [vmem:[#allocation10 + $0x40] sm:$0xf]
    %v2637 = vld [vmem:[#allocation10 + $0x44] sm:$0xf]
    %v2638 = vld [vmem:[#allocation10 + $0x48] sm:$0xf]
    %v2639 = vld [vmem:[#allocation10 + $0x4c] sm:$0xf]
    %v2640 = vld [vmem:[#allocation10 + $0x50] sm:$0xf]
    %v2641 = vld [vmem:[#allocation10 + $0x54] sm:$0xf]
    %v2642 = vld [vmem:[#allocation10 + $0x58] sm:$0xf]
    %v2643 = vld [vmem:[#allocation10 + $0x5c] sm:$0xf]
    %v2644 = vld [vmem:[#allocation10 + $0x60] sm:$0xf]
    %v2645 = vld [vmem:[#allocation10 + $0x64] sm:$0xf]
    %v2646 = vld [vmem:[#allocation10 + $0x68] sm:$0xf]
    %v2647 = vld [vmem:[#allocation10 + $0x6c] sm:$0xf]
    %v2648 = vld [vmem:[#allocation10 + $0x70] sm:$0xf]
    %v2649 = vld [vmem:[#allocation10 + $0x74] sm:$0xf]
    %v2650 = vld [vmem:[#allocation10 + $0x78] sm:$0xf]
    %v2651 = vld [vmem:[#allocation10 + $0x7c] sm:$0xf]
    %v2652 = vld [vmem:[#allocation10 + $0x80] sm:$0xf]
    %v2653 = vld [vmem:[#allocation10 + $0x84] sm:$0xf]
    %v2654 = vld [vmem:[#allocation10 + $0x88] sm:$0xf]
    %v2655 = vld [vmem:[#allocation10 + $0x8c] sm:$0xf]
    %v2656 = vld [vmem:[#allocation10 + $0x90] sm:$0xf]
    %v2657 = vld [vmem:[#allocation10 + $0x94] sm:$0xf]
    %v2658 = vld [vmem:[#allocation10 + $0x98] sm:$0xf]
    %v2659 = vld [vmem:[#allocation10 + $0x9c] sm:$0xf]
    %v2660 = vld [vmem:[#allocation10 + $0xa0] sm:$0xf]
    %v2661 = vld [vmem:[#allocation10 + $0xa4] sm:$0xf]
    %v2662 = vld [vmem:[#allocation10 + $0xa8] sm:$0xf]
    %v2663 = vld [vmem:[#allocation10 + $0xac] sm:$0xf]
    %v2664 = vld [vmem:[#allocation10 + $0xb0] sm:$0xf]
    %v2665 = vld [vmem:[#allocation10 + $0xb4] sm:$0xf]
    %v2666 = vld [vmem:[#allocation10 + $0xb8] sm:$0xf]
    %v2667 = vld [vmem:[#allocation10 + $0xbc] sm:$0xf]
    %v2668 = vld [vmem:[#allocation10 + $0xc0] sm:$0xf]
    %v2669 = vld [vmem:[#allocation10 + $0xc4] sm:$0xf]
    %v2670 = vld [vmem:[#allocation10 + $0xc8] sm:$0xf]
    %v2671 = vld [vmem:[#allocation10 + $0xcc] sm:$0xf]
    %v2672 = vld [vmem:[#allocation10 + $0xd0] sm:$0xf]
    %v2673 = vld [vmem:[#allocation10 + $0xd4] sm:$0xf]
    %v2674 = vld [vmem:[#allocation10 + $0xd8] sm:$0xf]
    %v2675 = vld [vmem:[#allocation10 + $0xdc] sm:$0xf]
    %v2676 = vld [vmem:[#allocation10 + $0xe0] sm:$0xf]
    %v2677 = vld [vmem:[#allocation10 + $0xe4] sm:$0xf]
    %v2678 = vld [vmem:[#allocation10 + $0xe8] sm:$0xf]
    %v2679 = vld [vmem:[#allocation10 + $0xec] sm:$0xf]
    %v2680 = vld [vmem:[#allocation10 + $0xf0] sm:$0xf]
    %v2681 = vld [vmem:[#allocation10 + $0xf4] sm:$0xf]
    %v2682 = vld [vmem:[#allocation10 + $0xf8] sm:$0xf]
    %v2683 = vld [vmem:[#allocation10 + $0xfc] sm:$0xf]
    %v2684 = vld [vmem:[#allocation10 + $0x100] sm:$0xf]
    %v2685 = vld [vmem:[#allocation10 + $0x104] sm:$0xf]
    %v2686 = vld [vmem:[#allocation10 + $0x108] sm:$0xf]
    %v2687 = vld [vmem:[#allocation10 + $0x10c] sm:$0xf]
    %v2688 = vld [vmem:[#allocation10 + $0x110] sm:$0xf]
    %v2689 = vld [vmem:[#allocation10 + $0x114] sm:$0xf]
    %v2690 = vld [vmem:[#allocation10 + $0x118] sm:$0xf]
    %v2691 = vld [vmem:[#allocation10 + $0x11c] sm:$0xf]
    %v2692 = vld [vmem:[#allocation10 + $0x120] sm:$0xf]
    %v2693 = vld [vmem:[#allocation10 + $0x124] sm:$0xf]
    %v2694 = vld [vmem:[#allocation10 + $0x128] sm:$0xf]
    %v2695 = vld [vmem:[#allocation10 + $0x12c] sm:$0xf]
    %v2696 = vld [vmem:[#allocation10 + $0x130] sm:$0xf]
    %v2697 = vld [vmem:[#allocation10 + $0x134] sm:$0xf]
    %v2698 = vld [vmem:[#allocation10 + $0x138] sm:$0xf]
    %v2699 = vld [vmem:[#allocation10 + $0x13c] sm:$0xf]
    %v2700 = vld [vmem:[#allocation10 + $0x140] sm:$0xf]
    %v2701 = vld [vmem:[#allocation10 + $0x144] sm:$0xf]
    %v2702 = vld [vmem:[#allocation10 + $0x148] sm:$0xf]
    %v2703 = vld [vmem:[#allocation10 + $0x14c] sm:$0xf]
    %v2704 = vld [vmem:[#allocation10 + $0x150] sm:$0xf]
    %v2705 = vld [vmem:[#allocation10 + $0x154] sm:$0xf]
    %v2706 = vld [vmem:[#allocation10 + $0x158] sm:$0xf]
    %v2707 = vld [vmem:[#allocation10 + $0x15c] sm:$0xf]
    %v2708 = vld [vmem:[#allocation10 + $0x160] sm:$0xf]
    %v2709 = vld [vmem:[#allocation10 + $0x164] sm:$0xf]
    %v2710 = vld [vmem:[#allocation10 + $0x168] sm:$0xf]
    %v2711 = vld [vmem:[#allocation10 + $0x16c] sm:$0xf]
    %v2712 = vld [vmem:[#allocation10 + $0x170] sm:$0xf]
    %v2713 = vld [vmem:[#allocation10 + $0x174] sm:$0xf]
    %v2714 = vld [vmem:[#allocation10 + $0x178] sm:$0xf]
    %v2715 = vld [vmem:[#allocation10 + $0x17c] sm:$0xf]
    %v2716 = vld [vmem:[#allocation10 + $0x180] sm:$0xf]
    %v2717 = vld [vmem:[#allocation10 + $0x184] sm:$0xf]
    %v2718 = vld [vmem:[#allocation10 + $0x188] sm:$0xf]
    %v2719 = vld [vmem:[#allocation10 + $0x18c] sm:$0xf]
    %v2720 = vld [vmem:[#allocation10 + $0x190] sm:$0xf]
    %v2721 = vld [vmem:[#allocation10 + $0x194] sm:$0xf]
    %v2722 = vld [vmem:[#allocation10 + $0x198] sm:$0xf]
    %v2723 = vld [vmem:[#allocation10 + $0x19c] sm:$0xf]
    %v2724 = vld [vmem:[#allocation10 + $0x1a0] sm:$0xf]
    %v2725 = vld [vmem:[#allocation10 + $0x1a4] sm:$0xf]
    %v2726 = vld [vmem:[#allocation10 + $0x1a8] sm:$0xf]
    %v2727 = vld [vmem:[#allocation10 + $0x1ac] sm:$0xf]
    %v2728 = vld [vmem:[#allocation10 + $0x1b0] sm:$0xf]
    %v2729 = vld [vmem:[#allocation10 + $0x1b4] sm:$0xf]
    %v2730 = vld [vmem:[#allocation10 + $0x1b8] sm:$0xf]
    %v2731 = vld [vmem:[#allocation10 + $0x1bc] sm:$0xf]
    %v2732 = vld [vmem:[#allocation10 + $0x1c0] sm:$0xf]
    %v2733 = vld [vmem:[#allocation10 + $0x1c4] sm:$0xf]
    %v2734 = vld [vmem:[#allocation10 + $0x1c8] sm:$0xf]
    %v2735 = vld [vmem:[#allocation10 + $0x1cc] sm:$0xf]
    %v2736 = vld [vmem:[#allocation10 + $0x1d0] sm:$0xf]
    %v2737 = vld [vmem:[#allocation10 + $0x1d4] sm:$0xf]
    %v2738 = vld [vmem:[#allocation10 + $0x1d8] sm:$0xf]
    %v2739 = vld [vmem:[#allocation10 + $0x1dc] sm:$0xf]
    %v2740 = vld [vmem:[#allocation10 + $0x1e0] sm:$0xf]
    %v2741 = vld [vmem:[#allocation10 + $0x1e4] sm:$0xf]
    %v2742 = vld [vmem:[#allocation10 + $0x1e8] sm:$0xf]
    %v2743 = vld [vmem:[#allocation10 + $0x1ec] sm:$0xf]
    %v2744 = vld [vmem:[#allocation10 + $0x1f0] sm:$0xf]
    %v2745 = vld [vmem:[#allocation10 + $0x1f4] sm:$0xf]
    %v2746 = vld [vmem:[#allocation10 + $0x1f8] sm:$0xf]
    %v2747 = vld [vmem:[#allocation10 + $0x1fc] sm:$0xf]
    %v2748 = vld [vmem:[%s8] sm:$0x1]
    %v2750 = vlaneseq
    %v2751 = vshrl.u32 %v2750, 7
    %v2752 = vsub.s32 0, %v2751
    %v2753 = vrot.slane %v2748, %v2752
    %v2883 = vunpack.c.l.b16 %v2620
    %v2884 = vunpack.c.l.b16 %v2621
    %v2885 = vunpack.c.l.b16 %v2622
    %v2886 = vunpack.c.l.b16 %v2623
    %v2887 = vunpack.c.l.b16 %v2624
    %v2888 = vunpack.c.l.b16 %v2625
    %v2889 = vunpack.c.l.b16 %v2626
    %v2890 = vunpack.c.l.b16 %v2627
    %v2891 = vunpack.c.l.b16 %v2628
    %v2892 = vunpack.c.l.b16 %v2629
    %v2893 = vunpack.c.l.b16 %v2630
    %v2894 = vunpack.c.l.b16 %v2631
    %v2895 = vunpack.c.l.b16 %v2632
    %v2896 = vunpack.c.l.b16 %v2633
    %v2897 = vunpack.c.l.b16 %v2634
    %v2898 = vunpack.c.l.b16 %v2635
    %v2899 = vunpack.c.l.b16 %v2636
    %v2900 = vunpack.c.l.b16 %v2637
    %v2901 = vunpack.c.l.b16 %v2638
    %v2902 = vunpack.c.l.b16 %v2639
    %v2903 = vunpack.c.l.b16 %v2640
    %v2904 = vunpack.c.l.b16 %v2641
    %v2905 = vunpack.c.l.b16 %v2642
    %v2906 = vunpack.c.l.b16 %v2643
    %v2907 = vunpack.c.l.b16 %v2644
    %v2908 = vunpack.c.l.b16 %v2645
    %v2909 = vunpack.c.l.b16 %v2646
    %v2910 = vunpack.c.l.b16 %v2647
    %v2911 = vunpack.c.l.b16 %v2648
    %v2912 = vunpack.c.l.b16 %v2649
    %v2913 = vunpack.c.l.b16 %v2650
    %v2914 = vunpack.c.l.b16 %v2651
    %v2915 = vunpack.c.l.b16 %v2652
    %v2916 = vunpack.c.l.b16 %v2653
    %v2917 = vunpack.c.l.b16 %v2654
    %v2918 = vunpack.c.l.b16 %v2655
    %v2919 = vunpack.c.l.b16 %v2656
    %v2920 = vunpack.c.l.b16 %v2657
    %v2921 = vunpack.c.l.b16 %v2658
    %v2922 = vunpack.c.l.b16 %v2659
    %v2923 = vunpack.c.l.b16 %v2660
    %v2924 = vunpack.c.l.b16 %v2661
    %v2925 = vunpack.c.l.b16 %v2662
    %v2926 = vunpack.c.l.b16 %v2663
    %v2927 = vunpack.c.l.b16 %v2664
    %v2928 = vunpack.c.l.b16 %v2665
    %v2929 = vunpack.c.l.b16 %v2666
    %v2930 = vunpack.c.l.b16 %v2667
    %v2931 = vunpack.c.l.b16 %v2668
    %v2932 = vunpack.c.l.b16 %v2669
    %v2933 = vunpack.c.l.b16 %v2670
    %v2934 = vunpack.c.l.b16 %v2671
    %v2935 = vunpack.c.l.b16 %v2672
    %v2936 = vunpack.c.l.b16 %v2673
    %v2937 = vunpack.c.l.b16 %v2674
    %v2938 = vunpack.c.l.b16 %v2675
    %v2939 = vunpack.c.l.b16 %v2676
    %v2940 = vunpack.c.l.b16 %v2677
    %v2941 = vunpack.c.l.b16 %v2678
    %v2942 = vunpack.c.l.b16 %v2679
    %v2943 = vunpack.c.l.b16 %v2680
    %v2944 = vunpack.c.l.b16 %v2681
    %v2945 = vunpack.c.l.b16 %v2682
    %v2946 = vunpack.c.l.b16 %v2683
    %v2947 = vunpack.c.l.b16 %v2684
    %v2948 = vunpack.c.l.b16 %v2685
    %v2949 = vunpack.c.l.b16 %v2686
    %v2950 = vunpack.c.l.b16 %v2687
    %v2951 = vunpack.c.l.b16 %v2688
    %v2952 = vunpack.c.l.b16 %v2689
    %v2953 = vunpack.c.l.b16 %v2690
    %v2954 = vunpack.c.l.b16 %v2691
    %v2955 = vunpack.c.l.b16 %v2692
    %v2956 = vunpack.c.l.b16 %v2693
    %v2957 = vunpack.c.l.b16 %v2694
    %v2958 = vunpack.c.l.b16 %v2695
    %v2959 = vunpack.c.l.b16 %v2696
    %v2960 = vunpack.c.l.b16 %v2697
    %v2961 = vunpack.c.l.b16 %v2698
    %v2962 = vunpack.c.l.b16 %v2699
    %v2963 = vunpack.c.l.b16 %v2700
    %v2964 = vunpack.c.l.b16 %v2701
    %v2965 = vunpack.c.l.b16 %v2702
    %v2966 = vunpack.c.l.b16 %v2703
    %v2967 = vunpack.c.l.b16 %v2704
    %v2968 = vunpack.c.l.b16 %v2705
    %v2969 = vunpack.c.l.b16 %v2706
    %v2970 = vunpack.c.l.b16 %v2707
    %v2971 = vunpack.c.l.b16 %v2708
    %v2972 = vunpack.c.l.b16 %v2709
    %v2973 = vunpack.c.l.b16 %v2710
    %v2974 = vunpack.c.l.b16 %v2711
    %v2975 = vunpack.c.l.b16 %v2712
    %v2976 = vunpack.c.l.b16 %v2713
    %v2977 = vunpack.c.l.b16 %v2714
    %v2978 = vunpack.c.l.b16 %v2715
    %v2979 = vunpack.c.l.b16 %v2716
    %v2980 = vunpack.c.l.b16 %v2717
    %v2981 = vunpack.c.l.b16 %v2718
    %v2982 = vunpack.c.l.b16 %v2719
    %v2983 = vunpack.c.l.b16 %v2720
    %v2984 = vunpack.c.l.b16 %v2721
    %v2985 = vunpack.c.l.b16 %v2722
    %v2986 = vunpack.c.l.b16 %v2723
    %v2987 = vunpack.c.l.b16 %v2724
    %v2988 = vunpack.c.l.b16 %v2725
    %v2989 = vunpack.c.l.b16 %v2726
    %v2990 = vunpack.c.l.b16 %v2727
    %v2991 = vunpack.c.l.b16 %v2728
    %v2992 = vunpack.c.l.b16 %v2729
    %v2993 = vunpack.c.l.b16 %v2730
    %v2994 = vunpack.c.l.b16 %v2731
    %v2995 = vunpack.c.l.b16 %v2732
    %v2996 = vunpack.c.l.b16 %v2733
    %v2997 = vunpack.c.l.b16 %v2734
    %v2998 = vunpack.c.l.b16 %v2735
    %v2999 = vunpack.c.l.b16 %v2736
    %v3000 = vunpack.c.l.b16 %v2737
    %v3001 = vunpack.c.l.b16 %v2738
    %v3002 = vunpack.c.l.b16 %v2739
    %v3003 = vunpack.c.l.b16 %v2740
    %v3004 = vunpack.c.l.b16 %v2741
    %v3005 = vunpack.c.l.b16 %v2742
    %v3006 = vunpack.c.l.b16 %v2743
    %v3007 = vunpack.c.l.b16 %v2744
    %v3008 = vunpack.c.l.b16 %v2745
    %v3009 = vunpack.c.l.b16 %v2746
    %v3010 = vunpack.c.l.b16 %v2747
    %v3011 = vpack.c.b16 %v2884, %v2883
    %v3012 = vpack.c.b16 %v2886, %v2885
    %v3013 = vpack.c.b16 %v2888, %v2887
    %v3014 = vpack.c.b16 %v2890, %v2889
    %v3015 = vpack.c.b16 %v2892, %v2891
    %v3016 = vpack.c.b16 %v2894, %v2893
    %v3017 = vpack.c.b16 %v2896, %v2895
    %v3018 = vpack.c.b16 %v2898, %v2897
    %v3019 = vpack.c.b16 %v2900, %v2899
    %v3020 = vpack.c.b16 %v2902, %v2901
    %v3021 = vpack.c.b16 %v2904, %v2903
    %v3022 = vpack.c.b16 %v2906, %v2905
    %v3023 = vpack.c.b16 %v2908, %v2907
    %v3024 = vpack.c.b16 %v2910, %v2909
    %v3025 = vpack.c.b16 %v2912, %v2911
    %v3026 = vpack.c.b16 %v2914, %v2913
    %v3027 = vpack.c.b16 %v2916, %v2915
    %v3028 = vpack.c.b16 %v2918, %v2917
    %v3029 = vpack.c.b16 %v2920, %v2919
    %v3030 = vpack.c.b16 %v2922, %v2921
    %v3031 = vpack.c.b16 %v2924, %v2923
    %v3032 = vpack.c.b16 %v2926, %v2925
    %v3033 = vpack.c.b16 %v2928, %v2927
    %v3034 = vpack.c.b16 %v2930, %v2929
    %v3035 = vpack.c.b16 %v2932, %v2931
    %v3036 = vpack.c.b16 %v2934, %v2933
    %v3037 = vpack.c.b16 %v2936, %v2935
    %v3038 = vpack.c.b16 %v2938, %v2937
    %v3039 = vpack.c.b16 %v2940, %v2939
    %v3040 = vpack.c.b16 %v2942, %v2941
    %v3041 = vpack.c.b16 %v2944, %v2943
    %v3042 = vpack.c.b16 %v2946, %v2945
    %v3043 = vpack.c.b16 %v2948, %v2947
    %v3044 = vpack.c.b16 %v2950, %v2949
    %v3045 = vpack.c.b16 %v2952, %v2951
    %v3046 = vpack.c.b16 %v2954, %v2953
    %v3047 = vpack.c.b16 %v2956, %v2955
    %v3048 = vpack.c.b16 %v2958, %v2957
    %v3049 = vpack.c.b16 %v2960, %v2959
    %v3050 = vpack.c.b16 %v2962, %v2961
    %v3051 = vpack.c.b16 %v2964, %v2963
    %v3052 = vpack.c.b16 %v2966, %v2965
    %v3053 = vpack.c.b16 %v2968, %v2967
    %v3054 = vpack.c.b16 %v2970, %v2969
    %v3055 = vpack.c.b16 %v2972, %v2971
    %v3056 = vpack.c.b16 %v2974, %v2973
    %v3057 = vpack.c.b16 %v2976, %v2975
    %v3058 = vpack.c.b16 %v2978, %v2977
    %v3059 = vpack.c.b16 %v2980, %v2979
    %v3060 = vpack.c.b16 %v2982, %v2981
    %v3061 = vpack.c.b16 %v2984, %v2983
    %v3062 = vpack.c.b16 %v2986, %v2985
    %v3063 = vpack.c.b16 %v2988, %v2987
    %v3064 = vpack.c.b16 %v2990, %v2989
    %v3065 = vpack.c.b16 %v2992, %v2991
    %v3066 = vpack.c.b16 %v2994, %v2993
    %v3067 = vpack.c.b16 %v2996, %v2995
    %v3068 = vpack.c.b16 %v2998, %v2997
    %v3069 = vpack.c.b16 %v3000, %v2999
    %v3070 = vpack.c.b16 %v3002, %v3001
    %v3071 = vpack.c.b16 %v3004, %v3003
    %v3072 = vpack.c.b16 %v3006, %v3005
    %v3073 = vpack.c.b16 %v3008, %v3007
    %v3074 = vpack.c.b16 %v3010, %v3009
    %3139 = vmatprep.subr.bf16.mxu0 0
    %3140 = vmatpush1.bf16.msra.mxu0 %v3011
    %3141 = vmatprep.subr.bf16.mxu0 0
    %3142 = vmatpush1.bf16.msra.mxu0 %v3012
    %3143 = vmatprep.subr.bf16.mxu0 0
    %3144 = vmatpush1.bf16.msra.mxu0 %v3013
    %3145 = vmatprep.subr.bf16.mxu0 0
    %3146 = vmatpush1.bf16.msra.mxu0 %v3014
    %3147 = vmatprep.subr.bf16.mxu0 0
    %3148 = vmatpush1.bf16.msra.mxu0 %v3015
    %3149 = vmatprep.subr.bf16.mxu0 0
    %3150 = vmatpush1.bf16.msra.mxu0 %v3016
    %3151 = vmatprep.subr.bf16.mxu0 0
    %3152 = vmatpush1.bf16.msra.mxu0 %v3017
    %3153 = vmatprep.subr.bf16.mxu0 0
    %3154 = vmatpush1.bf16.msra.mxu0 %v3018
    %3155 = vmatprep.subr.bf16.mxu0 0
    %3156 = vmatpush1.bf16.msra.mxu0 %v3019
    %3157 = vmatprep.subr.bf16.mxu0 0
    %3158 = vmatpush1.bf16.msra.mxu0 %v3020
    %3159 = vmatprep.subr.bf16.mxu0 0
    %3160 = vmatpush1.bf16.msra.mxu0 %v3021
    %3161 = vmatprep.subr.bf16.mxu0 0
    %3162 = vmatpush1.bf16.msra.mxu0 %v3022
    %3163 = vmatprep.subr.bf16.mxu0 0
    %3164 = vmatpush1.bf16.msra.mxu0 %v3023
    %3165 = vmatprep.subr.bf16.mxu0 0
    %3166 = vmatpush1.bf16.msra.mxu0 %v3024
    %3167 = vmatprep.subr.bf16.mxu0 0
    %3168 = vmatpush1.bf16.msra.mxu0 %v3025
    %3169 = vmatprep.subr.bf16.mxu0 0
    %3170 = vmatpush1.bf16.msra.mxu0 %v3026
    %3171 = vmatprep.mubr.bf16.mxu0 %v2613
    %3172 = vmatmul.mubr.bf16.gmra.mrb[0].mxu0 %v2612
    %v3173 = vpop.f32.mrb[0].mxu0
    %v3174 = vadd.f32 %v2753, %v3173
    %v3175 = vpop.f32.mrb[0].mxu0
    %v3176 = vpop.f32.mrb[0].mxu0
    %v3177 = vpop.f32.mrb[0].mxu0
    %3178 = vdwg.mxu0
    %3179 = vmatprep.subr.bf16.mxu0 0
    %3180 = vmatpush1.bf16.msra.mxu0 %v3027
    %3181 = vmatprep.subr.bf16.mxu0 0
    %3182 = vmatpush1.bf16.msra.mxu0 %v3028
    %3183 = vmatprep.subr.bf16.mxu0 0
    %3184 = vmatpush1.bf16.msra.mxu0 %v3029
    %3185 = vmatprep.subr.bf16.mxu0 0
    %3186 = vmatpush1.bf16.msra.mxu0 %v3030
    %3187 = vmatprep.subr.bf16.mxu0 0
    %3188 = vmatpush1.bf16.msra.mxu0 %v3031
    %3189 = vmatprep.subr.bf16.mxu0 0
    %3190 = vmatpush1.bf16.msra.mxu0 %v3032
    %3191 = vmatprep.subr.bf16.mxu0 0
    %3192 = vmatpush1.bf16.msra.mxu0 %v3033
    %3193 = vmatprep.subr.bf16.mxu0 0
    %3194 = vmatpush1.bf16.msra.mxu0 %v3034
    %3195 = vmatprep.subr.bf16.mxu0 0
    %3196 = vmatpush1.bf16.msra.mxu0 %v3035
    %3197 = vmatprep.subr.bf16.mxu0 0
    %3198 = vmatpush1.bf16.msra.mxu0 %v3036
    %3199 = vmatprep.subr.bf16.mxu0 0
    %3200 = vmatpush1.bf16.msra.mxu0 %v3037
    %3201 = vmatprep.subr.bf16.mxu0 0
    %3202 = vmatpush1.bf16.msra.mxu0 %v3038
    %3203 = vmatprep.subr.bf16.mxu0 0
    %3204 = vmatpush1.bf16.msra.mxu0 %v3039
    %3205 = vmatprep.subr.bf16.mxu0 0
    %3206 = vmatpush1.bf16.msra.mxu0 %v3040
    %3207 = vmatprep.subr.bf16.mxu0 0
    %3208 = vmatpush1.bf16.msra.mxu0 %v3041
    %3209 = vmatprep.subr.bf16.mxu0 0
    %3210 = vmatpush1.bf16.msra.mxu0 %v3042
    %3211 = vmatprep.mubr.bf16.mxu0 %v2615
    %3212 = vmatmul.mubr.bf16.gmra.mrb[0].mxu0 %v2614
    %v3213 = vpop.f32.mrb[0].mxu0
    %v3214 = vadd.f32 %v3174, %v3213
    %v3215 = vpop.f32.mrb[0].mxu0
    %v3216 = vpop.f32.mrb[0].mxu0
    %v3217 = vpop.f32.mrb[0].mxu0
    %3218 = vdwg.mxu0
    %3219 = vmatprep.subr.bf16.mxu0 0
    %3220 = vmatpush1.bf16.msra.mxu0 %v3043
    %3221 = vmatprep.subr.bf16.mxu0 0
    %3222 = vmatpush1.bf16.msra.mxu0 %v3044
    %3223 = vmatprep.subr.bf16.mxu0 0
    %3224 = vmatpush1.bf16.msra.mxu0 %v3045
    %3225 = vmatprep.subr.bf16.mxu0 0
    %3226 = vmatpush1.bf16.msra.mxu0 %v3046
    %3227 = vmatprep.subr.bf16.mxu0 0
    %3228 = vmatpush1.bf16.msra.mxu0 %v3047
    %3229 = vmatprep.subr.bf16.mxu0 0
    %3230 = vmatpush1.bf16.msra.mxu0 %v3048
    %3231 = vmatprep.subr.bf16.mxu0 0
    %3232 = vmatpush1.bf16.msra.mxu0 %v3049
    %3233 = vmatprep.subr.bf16.mxu0 0
    %3234 = vmatpush1.bf16.msra.mxu0 %v3050
    %3235 = vmatprep.subr.bf16.mxu0 0
    %3236 = vmatpush1.bf16.msra.mxu0 %v3051
    %3237 = vmatprep.subr.bf16.mxu0 0
    %3238 = vmatpush1.bf16.msra.mxu0 %v3052
    %3239 = vmatprep.subr.bf16.mxu0 0
    %3240 = vmatpush1.bf16.msra.mxu0 %v3053
    %3241 = vmatprep.subr.bf16.mxu0 0
    %3242 = vmatpush1.bf16.msra.mxu0 %v3054
    %3243 = vmatprep.subr.bf16.mxu0 0
    %3244 = vmatpush1.bf16.msra.mxu0 %v3055
    %3245 = vmatprep.subr.bf16.mxu0 0
    %3246 = vmatpush1.bf16.msra.mxu0 %v3056
    %3247 = vmatprep.subr.bf16.mxu0 0
    %3248 = vmatpush1.bf16.msra.mxu0 %v3057
    %3249 = vmatprep.subr.bf16.mxu0 0
    %3250 = vmatpush1.bf16.msra.mxu0 %v3058
    %3251 = vmatprep.mubr.bf16.mxu0 %v2617
    %3252 = vmatmul.mubr.bf16.gmra.mrb[0].mxu0 %v2616
    %v3253 = vpop.f32.mrb[0].mxu0
    %v3254 = vadd.f32 %v3214, %v3253
    %v3255 = vpop.f32.mrb[0].mxu0
    %v3256 = vpop.f32.mrb[0].mxu0
    %v3257 = vpop.f32.mrb[0].mxu0
    %3258 = vdwg.mxu0
    %3259 = vmatprep.subr.bf16.mxu0 0
    %3260 = vmatpush1.bf16.msra.mxu0 %v3059
    %3261 = vmatprep.subr.bf16.mxu0 0
    %3262 = vmatpush1.bf16.msra.mxu0 %v3060
    %3263 = vmatprep.subr.bf16.mxu0 0
    %3264 = vmatpush1.bf16.msra.mxu0 %v3061
    %3265 = vmatprep.subr.bf16.mxu0 0
    %3266 = vmatpush1.bf16.msra.mxu0 %v3062
    %3267 = vmatprep.subr.bf16.mxu0 0
    %3268 = vmatpush1.bf16.msra.mxu0 %v3063
    %3269 = vmatprep.subr.bf16.mxu0 0
    %3270 = vmatpush1.bf16.msra.mxu0 %v3064
    %3271 = vmatprep.subr.bf16.mxu0 0
    %3272 = vmatpush1.bf16.msra.mxu0 %v3065
    %3273 = vmatprep.subr.bf16.mxu0 0
    %3274 = vmatpush1.bf16.msra.mxu0 %v3066
    %3275 = vmatprep.subr.bf16.mxu0 0
    %3276 = vmatpush1.bf16.msra.mxu0 %v3067
    %3277 = vmatprep.subr.bf16.mxu0 0
    %3278 = vmatpush1.bf16.msra.mxu0 %v3068
    %3279 = vmatprep.subr.bf16.mxu0 0
    %3280 = vmatpush1.bf16.msra.mxu0 %v3069
    %3281 = vmatprep.subr.bf16.mxu0 0
    %3282 = vmatpush1.bf16.msra.mxu0 %v3070
    %3283 = vmatprep.subr.bf16.mxu0 0
    %3284 = vmatpush1.bf16.msra.mxu0 %v3071
    %3285 = vmatprep.subr.bf16.mxu0 0
    %3286 = vmatpush1.bf16.msra.mxu0 %v3072
    %3287 = vmatprep.subr.bf16.mxu0 0
    %3288 = vmatpush1.bf16.msra.mxu0 %v3073
    %3289 = vmatprep.subr.bf16.mxu0 0
    %3290 = vmatpush1.bf16.msra.mxu0 %v3074
    %3291 = vmatprep.mubr.bf16.mxu0 %v2619
    %3292 = vmatmul.mubr.bf16.gmra.mrb[0].mxu0 %v2618
    %v3293 = vpop.f32.mrb[0].mxu0
    %v3294 = vadd.f32 %v3254, %v3293
    %v3295 = vpop.f32.mrb[0].mxu0
    %v3296 = vpop.f32.mrb[0].mxu0
    %v3297 = vpop.f32.mrb[0].mxu0
    %3298 = vdwg.mxu0
    %v3299 = vtanh.pop %v3294
    %3300 = vst [vmem:[#allocation11] sm:$0xff] %v3299
    // Predicated region
    $region58: #{tpu_custom_call.1} parent=1 // pred_check
      _
    $region59: #{tpu_custom_call.1} parent=1 // pred_check_branch
      %3302 = sbr.rel (0) target = $region61
    $region60: #{tpu_custom_call.1} parent=1 // pred_region
      %s3304 = ssub.s32 128, 128
      %3305 = vsyncadd [#allocation4], %s3304
      %s3307 = sshll.u32 [#allocation11], 4
      %s3308 = int_to_ptr.vmem [resolvable:$true] %s3307
      %3310 = dma.vmem_to_hbm [thread:$0]  %s3308, 128, %s9, [#allocation4]
    $region61: #{tpu_custom_call.1} parent=1 // pred_fallthru
      _
    // Predicated region
    $region62: #{tpu_custom_call.1} parent=1 // pred_check
      _
    $region63: #{tpu_custom_call.1} parent=1 // pred_check_branch
      %3312 = sbr.rel (0) target = $region65
    $region64: #{tpu_custom_call.1} parent=1 // pred_region
      %3313 = dma.done [#allocation4], 128
    $region65: #{tpu_custom_call.1} parent=1 // pred_fallthru
      _
    %3314 = vsyncpa [#allocation3], 1
    %3315 = vsyncpa [#allocation6], 1
    %3316 = vsyncpa [#allocation9], 1
    %3317 = vsyncpa [#allocation4], 1

</llo_original>
